<compile_context>
chip_gen: v6e
topology: v6e:2x2x1
jax: 0.10.0
libtpu: 0.0.40
codegen_flags: <defaults>
</compile_context>

<pallas_src>
import numpy as np
import jax
import jax.numpy as jnp
from jax import lax
from jax.experimental import pallas as pl
from jax.experimental.pallas import tpu as pltpu

TILE = 128  # multiple of 8 (sublanes) and 128 (lanes); K=128 saturates v5e MXU


def _dct_coeff_8x8():
    """The deterministic 8x8 DCT coefficient matrix from DctBasic.dct()."""
    coff = np.zeros((8, 8), dtype=np.float32)
    coff[0, :] = np.sqrt(1.0 / 8.0)
    for i in range(1, 8):
        for j in range(8):
            coff[i, j] = np.cos(np.pi * i * (2 * j + 1) / 16.0) * np.sqrt(2.0 / 8.0)
    return coff


def dct_kernel(x_ref, dh_ref, dwt_ref, o_ref):
    # x_ref block: (1, 3, TILE, TILE) -> one spatial tile of one batch element.
    x = x_ref[0]                                        # (3, T, T)
    # (clamp(-1,1)+1) * 255/2 ; pad region was filled with -1 so it maps to 0,
    # exactly matching ZeroPad2d applied after the scale in the PyTorch code.
    x = (jnp.clip(x, -1.0, 1.0) + 1.0) * (255.0 / 2.0)

    r, g, b = x[0], x[1], x[2]
    y = 0.299 * r + 0.587 * g + 0.114 * b
    u = -0.1687 * r - 0.3313 * g + 0.5 * b
    v = 0.5 * r - 0.4187 * g - 0.0813 * b

    dh = dh_ref[...]                                    # (T, T) block-diag DCT
    dwt = dwt_ref[...]                                  # (T, T) its transpose

    # Row transform once for all channels: (T,T) @ (T, 3T) -> one wide MXU op.
    yuv = jnp.concatenate([y, u, v], axis=-1)           # (T, 3T)
    t = jnp.dot(dh, yuv, preferred_element_type=jnp.float32)

    # Column transform per channel (lane-aligned 128-wide slices).
    dy = jnp.dot(t[:, 0 * TILE:1 * TILE], dwt, preferred_element_type=jnp.float32)
    du = jnp.dot(t[:, 1 * TILE:2 * TILE], dwt, preferred_element_type=jnp.float32)
    dv = jnp.dot(t[:, 2 * TILE:3 * TILE], dwt, preferred_element_type=jnp.float32)

    # F.normalize(dim=1) with eps=1e-12, fused:  d * rsqrt(max(sumsq, eps^2)).
    sumsq = dy * dy + du * du + dv * dv
    inv = lax.rsqrt(jnp.maximum(sumsq, 1e-24))
    o_ref[0, 0] = jnp.clip(dy * inv, -1.0, 1.0)
    o_ref[0, 1] = jnp.clip(du * inv, -1.0, 1.0)
    o_ref[0, 2] = jnp.clip(dv * inv, -1.0, 1.0)


def dct_forward(image):
    """Pallas implementation of DCT.forward.  image: (B, 3, H, W) float32 NCHW."""
    B, C, H, W = image.shape
    assert C == 3, "DCT expects RGB (3-channel) input"

    # Spatial size the PyTorch module emits (padded up to multiples of 8).
    pad_h8 = (8 - H % 8) % 8
    pad_w8 = (8 - W % 8) % 8
    Hp8, Wp8 = H + pad_h8, W + pad_w8

    # Further pad up to TILE multiples so every block is (8,128)-aligned and
    # output stores are lane-dense.  Extra 8x8 blocks of zeros are harmless.
    Hpad = ((Hp8 + TILE - 1) // TILE) * TILE
    Wpad = ((Wp8 + TILE - 1) // TILE) * TILE

    # Pad with -1 so the in-kernel (clamp+1)*127.5 turns the pad region into 0.
    x = jnp.pad(
        image.astype(jnp.float32),
        ((0, 0), (0, 0), (0, Hpad - H), (0, Wpad - W)),
        constant_values=-1.0,
    )

    coff = _dct_coeff_8x8()
    dh_np = np.kron(np.eye(TILE // 8, dtype=np.float32), coff)   # (128, 128)
    dh = jnp.asarray(dh_np)
    dwt = jnp.asarray(np.ascontiguousarray(dh_np.T))

    out = pl.pallas_call(
        dct_kernel,
        out_shape=jax.ShapeDtypeStruct((B, 3, Hpad, Wpad), jnp.float32),
        grid=(B, Hpad // TILE, Wpad // TILE),
        in_specs=[
            pl.BlockSpec((1, 3, TILE, TILE), lambda b, i, j: (b, 0, i, j)),
            pl.BlockSpec((TILE, TILE), lambda b, i, j: (0, 0)),
            pl.BlockSpec((TILE, TILE), lambda b, i, j: (0, 0)),
        ],
        out_specs=pl.BlockSpec((1, 3, TILE, TILE), lambda b, i, j: (b, 0, i, j)),
        compiler_params=pltpu.CompilerParams(
            dimension_semantics=("parallel", "parallel", "parallel")
        ),
    )(x, dh, dwt)

    # The PyTorch module returns the 8-aligned padded size; crop the extra
    # tile padding we added for lane alignment.
    return out[:, :, :Hp8, :Wp8]


def _reference_forward(image):
    """Pure-JAX reference mirroring the PyTorch module, for a sanity check."""
    B, C, H, W = image.shape
    x = (jnp.clip(image, -1.0, 1.0) + 1.0) * 255.0 / 2.0
    pad_h = (8 - H % 8) % 8
    pad_w = (8 - W % 8) % 8
    x = jnp.pad(x, ((0, 0), (0, 0), (0, pad_h), (0, pad_w)))
    r, g, b = x[:, 0:1], x[:, 1:2], x[:, 2:3]
    yuv = jnp.concatenate(
        [
            0.299 * r + 0.587 * g + 0.114 * b,
            -0.1687 * r - 0.3313 * g + 0.5 * b,
            0.5 * r - 0.4187 * g - 0.0813 * b,
        ],
        axis=1,
    )
    Hp, Wp = H + pad_h, W + pad_w
    coff = _dct_coeff_8x8()
    dh = jnp.asarray(np.kron(np.eye(Hp // 8, dtype=np.float32), coff))
    dw = jnp.asarray(np.kron(np.eye(Wp // 8, dtype=np.float32), coff))
    d = jnp.einsum("ij,bcjw->bciw", dh, yuv)
    d = jnp.einsum("bchw,vw->bchv", d, dw)
    norm = jnp.sqrt(jnp.sum(d * d, axis=1, keepdims=True))
    return jnp.clip(d / jnp.maximum(norm, 1e-12), -1.0, 1.0)


if __name__ == "__main__":
    key = jax.random.PRNGKey(0)
    image = jax.random.uniform(key, (2, 3, 16, 16), jnp.float32, minval=-1.5, maxval=1.5)

    out = dct_forward(image)
    out = jax.block_until_ready(out)

    ref = _reference_forward(image)
    np.testing.assert_allclose(np.asarray(out), np.asarray(ref), rtol=1e-4, atol=1e-4)

    print("KERNEL_OK")
</pallas_src>

<mosaic_0001>
module attributes {stable_mosaic.version = 11 : i64} {
  func.func @dct_kernel(%arg0: i32, %arg1: i32, %arg2: i32, %arg3: memref<1x3x128x128xf32, #tpu.memory_space<vmem>>, %arg4: memref<128x128xf32, #tpu.memory_space<vmem>>, %arg5: memref<128x128xf32, #tpu.memory_space<vmem>>, %arg6: memref<1x3x128x128xf32, #tpu.memory_space<vmem>>) attributes {dimension_semantics = [#tpu.dimension_semantics<parallel>, #tpu.dimension_semantics<parallel>, #tpu.dimension_semantics<parallel>], iteration_bounds = array<i64: 2, 1, 1>, scalar_prefetch = 0 : i64, scratch_operands = 0 : i64, tpu.core_type = #tpu.core_type<tc>, window_params = [{transform_indices = @transform_0, window_bounds = array<i64: 1, 3, 128, 128>}, {pipeline_mode = #tpu.pipeline_mode<synchronous>, transform_indices = @transform_1, window_bounds = array<i64: 128, 128>}, {pipeline_mode = #tpu.pipeline_mode<synchronous>, transform_indices = @transform_2, window_bounds = array<i64: 128, 128>}, {transform_indices = @transform_3, window_bounds = array<i64: 1, 3, 128, 128>}]} {
    %c0 = arith.constant 0 : index
    %c0_0 = arith.constant 0 : index
    %c0_1 = arith.constant 0 : index
    %c0_2 = arith.constant 0 : index
    %0 = vector.load %arg3[%c0, %c0_0, %c0_1, %c0_2] : memref<1x3x128x128xf32, #tpu.memory_space<vmem>>, vector<1x3x128x128xf32>
    %1 = vector.shape_cast %0 : vector<1x3x128x128xf32> to vector<3x128x128xf32>
    %cst = arith.constant -1.000000e+00 : f32
    %cst_3 = arith.constant 1.000000e+00 : f32
    %2 = vector.broadcast %cst : f32 to vector<3x128x128xf32>
    %3 = arith.maximumf %2, %1 : vector<3x128x128xf32>
    %4 = vector.broadcast %cst_3 : f32 to vector<3x128x128xf32>
    %5 = arith.minimumf %4, %3 : vector<3x128x128xf32>
    %cst_4 = arith.constant 1.000000e+00 : f32
    %6 = vector.broadcast %cst_4 : f32 to vector<3x128x128xf32>
    %7 = arith.addf %5, %6 : vector<3x128x128xf32>
    %cst_5 = arith.constant 1.275000e+02 : f32
    %8 = vector.broadcast %cst_5 : f32 to vector<3x128x128xf32>
    %9 = arith.mulf %7, %8 : vector<3x128x128xf32>
    %10 = vector.extract_strided_slice %9 {offsets = [0, 0, 0], sizes = [1, 128, 128], strides = [1, 1, 1]} : vector<3x128x128xf32> to vector<1x128x128xf32>
    %11 = vector.shape_cast %10 : vector<1x128x128xf32> to vector<128x128xf32>
    %12 = vector.extract_strided_slice %9 {offsets = [1, 0, 0], sizes = [1, 128, 128], strides = [1, 1, 1]} : vector<3x128x128xf32> to vector<1x128x128xf32>
    %13 = vector.shape_cast %12 : vector<1x128x128xf32> to vector<128x128xf32>
    %14 = vector.extract_strided_slice %9 {offsets = [2, 0, 0], sizes = [1, 128, 128], strides = [1, 1, 1]} : vector<3x128x128xf32> to vector<1x128x128xf32>
    %15 = vector.shape_cast %14 : vector<1x128x128xf32> to vector<128x128xf32>
    %cst_6 = arith.constant 2.990000e-01 : f32
    %16 = vector.broadcast %cst_6 : f32 to vector<128x128xf32>
    %17 = arith.mulf %16, %11 : vector<128x128xf32>
    %cst_7 = arith.constant 5.870000e-01 : f32
    %18 = vector.broadcast %cst_7 : f32 to vector<128x128xf32>
    %19 = arith.mulf %18, %13 : vector<128x128xf32>
    %20 = arith.addf %17, %19 : vector<128x128xf32>
    %cst_8 = arith.constant 1.140000e-01 : f32
    %21 = vector.broadcast %cst_8 : f32 to vector<128x128xf32>
    %22 = arith.mulf %21, %15 : vector<128x128xf32>
    %23 = arith.addf %20, %22 : vector<128x128xf32>
    %cst_9 = arith.constant -1.687000e-01 : f32
    %24 = vector.broadcast %cst_9 : f32 to vector<128x128xf32>
    %25 = arith.mulf %24, %11 : vector<128x128xf32>
    %cst_10 = arith.constant 3.313000e-01 : f32
    %26 = vector.broadcast %cst_10 : f32 to vector<128x128xf32>
    %27 = arith.mulf %26, %13 : vector<128x128xf32>
    %28 = arith.subf %25, %27 : vector<128x128xf32>
    %cst_11 = arith.constant 5.000000e-01 : f32
    %29 = vector.broadcast %cst_11 : f32 to vector<128x128xf32>
    %30 = arith.mulf %29, %15 : vector<128x128xf32>
    %31 = arith.addf %28, %30 : vector<128x128xf32>
    %cst_12 = arith.constant 5.000000e-01 : f32
    %32 = vector.broadcast %cst_12 : f32 to vector<128x128xf32>
    %33 = arith.mulf %32, %11 : vector<128x128xf32>
    %cst_13 = arith.constant 4.187000e-01 : f32
    %34 = vector.broadcast %cst_13 : f32 to vector<128x128xf32>
    %35 = arith.mulf %34, %13 : vector<128x128xf32>
    %36 = arith.subf %33, %35 : vector<128x128xf32>
    %cst_14 = arith.constant 0.0812999978 : f32
    %37 = vector.broadcast %cst_14 : f32 to vector<128x128xf32>
    %38 = arith.mulf %37, %15 : vector<128x128xf32>
    %39 = arith.subf %36, %38 : vector<128x128xf32>
    %c0_15 = arith.constant 0 : index
    %c0_16 = arith.constant 0 : index
    %40 = vector.load %arg4[%c0_15, %c0_16] : memref<128x128xf32, #tpu.memory_space<vmem>>, vector<128x128xf32>
    %c0_17 = arith.constant 0 : index
    %c0_18 = arith.constant 0 : index
    %41 = vector.load %arg5[%c0_17, %c0_18] : memref<128x128xf32, #tpu.memory_space<vmem>>, vector<128x128xf32>
    %42 = tpu.concatenate %23, %31, %39 in 1 : vector<128x128xf32>, vector<128x128xf32>, vector<128x128xf32> -> vector<128x384xf32>
    %cst_19 = arith.constant dense<0.000000e+00> : vector<128x384xf32>
    %43 = tpu.matmul %40, %42, %cst_19 {dimension_numbers = #tpu.dot_dimension_numbers<[1], [0], [0], [1], [0, 0, 1, 1], [], []>} : vector<128x128xf32>, vector<128x384xf32>, vector<128x384xf32> -> vector<128x384xf32>
    %44 = vector.extract_strided_slice %43 {offsets = [0, 0], sizes = [128, 128], strides = [1, 1]} : vector<128x384xf32> to vector<128x128xf32>
    %cst_20 = arith.constant dense<0.000000e+00> : vector<128x128xf32>
    %45 = tpu.matmul %44, %41, %cst_20 {dimension_numbers = #tpu.dot_dimension_numbers<[1], [0], [0], [1], [0, 0, 1, 1], [], []>} : vector<128x128xf32>, vector<128x128xf32>, vector<128x128xf32> -> vector<128x128xf32>
    %46 = vector.extract_strided_slice %43 {offsets = [0, 128], sizes = [128, 128], strides = [1, 1]} : vector<128x384xf32> to vector<128x128xf32>
    %cst_21 = arith.constant dense<0.000000e+00> : vector<128x128xf32>
    %47 = tpu.matmul %46, %41, %cst_21 {dimension_numbers = #tpu.dot_dimension_numbers<[1], [0], [0], [1], [0, 0, 1, 1], [], []>} : vector<128x128xf32>, vector<128x128xf32>, vector<128x128xf32> -> vector<128x128xf32>
    %48 = vector.extract_strided_slice %43 {offsets = [0, 256], sizes = [128, 128], strides = [1, 1]} : vector<128x384xf32> to vector<128x128xf32>
    %cst_22 = arith.constant dense<0.000000e+00> : vector<128x128xf32>
    %49 = tpu.matmul %48, %41, %cst_22 {dimension_numbers = #tpu.dot_dimension_numbers<[1], [0], [0], [1], [0, 0, 1, 1], [], []>} : vector<128x128xf32>, vector<128x128xf32>, vector<128x128xf32> -> vector<128x128xf32>
    %50 = arith.mulf %45, %45 : vector<128x128xf32>
    %51 = arith.mulf %47, %47 : vector<128x128xf32>
    %52 = arith.addf %50, %51 : vector<128x128xf32>
    %53 = arith.mulf %49, %49 : vector<128x128xf32>
    %54 = arith.addf %52, %53 : vector<128x128xf32>
    %cst_23 = arith.constant 1.000000e-24 : f32
    %55 = vector.broadcast %cst_23 : f32 to vector<128x128xf32>
    %56 = arith.maximumf %54, %55 : vector<128x128xf32>
    %57 = math.rsqrt %56 : vector<128x128xf32>
    %58 = arith.mulf %45, %57 : vector<128x128xf32>
    %cst_24 = arith.constant -1.000000e+00 : f32
    %cst_25 = arith.constant 1.000000e+00 : f32
    %59 = vector.broadcast %cst_24 : f32 to vector<128x128xf32>
    %60 = arith.maximumf %59, %58 : vector<128x128xf32>
    %61 = vector.broadcast %cst_25 : f32 to vector<128x128xf32>
    %62 = arith.minimumf %61, %60 : vector<128x128xf32>
    %c0_26 = arith.constant 0 : index
    %c0_27 = arith.constant 0 : index
    %c0_28 = arith.constant 0 : index
    %c0_29 = arith.constant 0 : index
    %63 = vector.load %arg6[%c0_26, %c0_27, %c0_28, %c0_29] : memref<1x3x128x128xf32, #tpu.memory_space<vmem>>, vector<1x1x128x128xf32>
    %64 = vector.shape_cast %63 : vector<1x1x128x128xf32> to vector<128x128xf32>
    %65 = vector.shape_cast %62 : vector<128x128xf32> to vector<1x1x128x128xf32>
    tpu.vector_store %arg6[%c0_26, %c0_27, %c0_28, %c0_29], %65 {strides = array<i32>} : memref<1x3x128x128xf32, #tpu.memory_space<vmem>>, vector<1x1x128x128xf32>,
    %66 = arith.mulf %47, %57 : vector<128x128xf32>
    %cst_30 = arith.constant -1.000000e+00 : f32
    %cst_31 = arith.constant 1.000000e+00 : f32
    %67 = vector.broadcast %cst_30 : f32 to vector<128x128xf32>
    %68 = arith.maximumf %67, %66 : vector<128x128xf32>
    %69 = vector.broadcast %cst_31 : f32 to vector<128x128xf32>
    %70 = arith.minimumf %69, %68 : vector<128x128xf32>
    %c0_32 = arith.constant 0 : index
    %c1 = arith.constant 1 : index
    %c0_33 = arith.constant 0 : index
    %c0_34 = arith.constant 0 : index
    %71 = vector.load %arg6[%c0_32, %c1, %c0_33, %c0_34] : memref<1x3x128x128xf32, #tpu.memory_space<vmem>>, vector<1x1x128x128xf32>
    %72 = vector.shape_cast %71 : vector<1x1x128x128xf32> to vector<128x128xf32>
    %73 = vector.shape_cast %70 : vector<128x128xf32> to vector<1x1x128x128xf32>
    tpu.vector_store %arg6[%c0_32, %c1, %c0_33, %c0_34], %73 {strides = array<i32>} : memref<1x3x128x128xf32, #tpu.memory_space<vmem>>, vector<1x1x128x128xf32>,
    %74 = arith.mulf %49, %57 : vector<128x128xf32>
    %cst_35 = arith.constant -1.000000e+00 : f32
    %cst_36 = arith.constant 1.000000e+00 : f32
    %75 = vector.broadcast %cst_35 : f32 to vector<128x128xf32>
    %76 = arith.maximumf %75, %74 : vector<128x128xf32>
    %77 = vector.broadcast %cst_36 : f32 to vector<128x128xf32>
    %78 = arith.minimumf %77, %76 : vector<128x128xf32>
    %c0_37 = arith.constant 0 : index
    %c2 = arith.constant 2 : index
    %c0_38 = arith.constant 0 : index
    %c0_39 = arith.constant 0 : index
    %79 = vector.load %arg6[%c0_37, %c2, %c0_38, %c0_39] : memref<1x3x128x128xf32, #tpu.memory_space<vmem>>, vector<1x1x128x128xf32>
    %80 = vector.shape_cast %79 : vector<1x1x128x128xf32> to vector<128x128xf32>
    %81 = vector.shape_cast %78 : vector<128x128xf32> to vector<1x1x128x128xf32>
    tpu.vector_store %arg6[%c0_37, %c2, %c0_38, %c0_39], %81 {strides = array<i32>} : memref<1x3x128x128xf32, #tpu.memory_space<vmem>>, vector<1x1x128x128xf32>,
    return
  }
  func.func @transform_0(%arg0: i32, %arg1: i32, %arg2: i32) -> (i32, i32, i32, i32) {
    %c0_i32 = arith.constant 0 : i32
    %c0_i32_0 = arith.constant 0 : i32
    return %arg0, %c0_i32, %arg1, %arg2 : i32, i32, i32, i32
  }
  func.func @transform_1(%arg0: i32, %arg1: i32, %arg2: i32) -> (i32, i32) {
    %c0_i32 = arith.constant 0 : i32
    %c0_i32_0 = arith.constant 0 : i32
    %c0_i32_1 = arith.constant 0 : i32
    return %c0_i32, %c0_i32_0 : i32, i32
  }
  func.func @transform_2(%arg0: i32, %arg1: i32, %arg2: i32) -> (i32, i32) {
    %c0_i32 = arith.constant 0 : i32
    %c0_i32_0 = arith.constant 0 : i32
    %c0_i32_1 = arith.constant 0 : i32
    return %c0_i32, %c0_i32_0 : i32, i32
  }
  func.func @transform_3(%arg0: i32, %arg1: i32, %arg2: i32) -> (i32, i32, i32, i32) {
    %c0_i32 = arith.constant 0 : i32
    %c0_i32_0 = arith.constant 0 : i32
    return %arg0, %c0_i32, %arg1, %arg2 : i32, i32, i32, i32
  }
}

</mosaic_0001>

<llo_original>
// kernel: tpu_custom_call.1
$region0: #{tpu_custom_call.1}
  #allocation0 [shape = 'u32[]', space=smem, size = 0x4, offset = 0x4, fixed_abs, tag = 'smem constant byte address 0x4 - core index']
  #allocation1 [shape = 'u32[144,128]{1,0:T(1,128)}', space=vmem, size = 0x12000, scoped, tag = 'internal scratch']
  %s0 = inlined_call_operand.hbm [shape: f32[2,3,128,128], index: 0, kind: input, shape index: {}]
  %s1 = inlined_call_operand.hbm [shape: f32[128,128], index: 1, kind: input, shape index: {}]
  %s2 = inlined_call_operand.hbm [shape: f32[128,128], index: 2, kind: input, shape index: {}]
  %s3 = inlined_call_operand.hbm [shape: f32[2,3,128,128], index: 3, kind: output, shape index: {}]
  %s4 = sld [smem:[#allocation0]]
  $region57: #{tpu_custom_call.1} parent=0
    _
  %s6 = ssub.s32 1, %s4
  %s7 = scalar_select 0, %s6, %s4
  $region1: #{tpu_custom_call.1} parent=0
    #allocation2 [shape = 'u8[393216]{0}', space=vmem, size = 0x60000, scoped, tag = 'input window, operand 0']
    #allocation3 [shape = 's32[2]{0}', space=sflag, size = 0x8, scoped, tag = 'scoped memory for tpu_custom_call.1']
    #allocation4 [shape = 's32[2]{0}', space=sflag, size = 0x8, scoped, tag = 'scoped memory for tpu_custom_call.1']
    #allocation5 [shape = 'u8[65536]{0}', space=vmem, size = 0x10000, scoped, tag = 'input window, operand 1, single buffered']
    #allocation6 [shape = 's32[1]{0}', space=sflag, size = 0x4, scoped, tag = 'scoped memory for tpu_custom_call.1']
    #allocation7 [shape = 'u8[65536]{0}', space=vmem, size = 0x10000, scoped, tag = 'input window, operand 2, single buffered']
    #allocation8 [shape = 'u8[393216]{0}', space=vmem, size = 0x60000, scoped, tag = 'output window, operand 0']
    %8 = vsyncpa [#allocation3], 0
    %s9 = scalar_lea.sflag [#allocation3], 1
    %10 = vsyncpa %s9, 0
    %11 = vsyncpa [#allocation6], 0
    %12 = vsyncpa [#allocation4], 0
    %s13 = scalar_lea.sflag [#allocation4], 1
    %14 = vsyncpa %s13, 0
    loop: start=0, step=1, limit=4
    $region2: #{tpu_custom_call.1} parent=1 // loop_pre_header
      _
    $region3: #{tpu_custom_call.1} parent=1 // loop_header
      %s16 = sphi 0, %s20
      %p17 = scmp.ge.s32.totalorder %s16, 4
      %s23 = sphi 0, %s42
      %s24 = sphi 0, %s38
      %s25 = sphi 0, %s34
      %s26 = sphi 0, %s23
      %s27 = sphi 0, %s24
      %s28 = sphi 0, %s25
      %s29 = sphi 0, %s26
      %s30 = sphi 0, %s27
      %s31 = sphi 0, %s28
      %s49 = sphi 0, %s51
      %s52 = sphi 0, %s49
      %s53 = sphi 0, %s52
      %s69 = sphi 0, %s53
      %s73 = sphi 0, %s73
      %s75 = sphi 0, %s73
      %s76 = sphi 0, %s75
      %s90 = sphi 0, %s76
      %s94 = sphi 0, %s94
      %s96 = sphi 0, %s94
      %s97 = sphi 0, %s96
      %s111 = sphi 0, %s97
      %s121 = sphi 0, %s123
      %s124 = sphi 0, %s121
      %s125 = sphi 0, %s124
      %s141 = sphi 0, %s125
    $region4: #{tpu_custom_call.1} parent=1 // loop_header_branch
      %19 = sbr.rel (%p17) target = $region8
    $region5: #{tpu_custom_call.1} parent=1 // loop_body
      %s21 = ssub.s32 %s16, 1
      %s22 = ssub.s32 %s16, 2
      %s32 = sadd.s32 1, %s25
      %p33 = scmp.ge.s32.totalorder %s32, 1
      %s34 = scalar_select %p33, 0, %s32
      %s35 = sadd.s32 1, %s24
      %s36 = scalar_select %p33, %s35, %s24
      %p37 = scmp.ge.s32.totalorder %s36, 1
      %s38 = scalar_select %p37, 0, %s36
      %s39 = sadd.s32 1, %s23
      %s40 = scalar_select %p37, %s39, %s23
      %p41 = scmp.ge.s32.totalorder %s40, 2
      %s42 = scalar_select %p41, 0, %s40
      %s43 = ssub.s32 %s23, %s42
      %s44 = ssub.s32 %s24, %s38
      %s45 = sor.u32 %s43, %s44
      %s46 = ssub.s32 %s25, %s34
      %s47 = sor.u32 %s45, %s46
      %p48 = scmp.eq.s32.totalorder %s47, 0
      %s50 = sadd.s32 %s49, 1
      %s51 = scalar_select %p48, %s49, %s50
      %p54 = pneg %p48
      %p55 = scmp.eq.s32.totalorder %s16, 1
      %p56 = por %p54, %p55
      %p57 = scmp.ne.s32.totalorder %s49, %s52
      %p58 = scmp.eq.s32.totalorder %s16, 0
      %p59 = por %p57, %p58
      %p60 = scmp.ne.s32.totalorder %s49, %s52
      %p61 = scmp.eq.s32.totalorder %s21, 1
      %p62 = por %p60, %p61
      %p63 = scmp.ne.s32.totalorder %s52, %s53
      %p64 = scmp.eq.s32.totalorder %s21, 0
      %p65 = por %p63, %p64
      %p66 = scmp.ne.s32.totalorder %s52, %s53
      %p67 = scmp.eq.s32.totalorder %s22, 1
      %p68 = por %p66, %p67
      %p70 = scmp.ne.s32.totalorder %s53, %s69
      %p71 = scmp.eq.s32.totalorder %s22, 0
      %p72 = por %p70, %p71
      %s74 = sadd.s32 %s73, 1
      %p77 = scmp.eq.s32.totalorder %s16, 1
      %p78 = scmp.ne.s32.totalorder %s73, %s75
      %p79 = scmp.eq.s32.totalorder %s16, 0
      %p80 = por %p78, %p79
      %p81 = scmp.ne.s32.totalorder %s73, %s75
      %p82 = scmp.eq.s32.totalorder %s21, 1
      %p83 = por %p81, %p82
      %p84 = scmp.ne.s32.totalorder %s75, %s76
      %p85 = scmp.eq.s32.totalorder %s21, 0
      %p86 = por %p84, %p85
      %p87 = scmp.ne.s32.totalorder %s75, %s76
      %p88 = scmp.eq.s32.totalorder %s22, 1
      %p89 = por %p87, %p88
      %p91 = scmp.ne.s32.totalorder %s76, %s90
      %p92 = scmp.eq.s32.totalorder %s22, 0
      %p93 = por %p91, %p92
      %s95 = sadd.s32 %s94, 1
      %p98 = scmp.eq.s32.totalorder %s16, 1
      %p99 = scmp.ne.s32.totalorder %s94, %s96
      %p100 = scmp.eq.s32.totalorder %s16, 0
      %p101 = por %p99, %p100
      %p102 = scmp.ne.s32.totalorder %s94, %s96
      %p103 = scmp.eq.s32.totalorder %s21, 1
      %p104 = por %p102, %p103
      %p105 = scmp.ne.s32.totalorder %s96, %s97
      %p106 = scmp.eq.s32.totalorder %s21, 0
      %p107 = por %p105, %p106
      %p108 = scmp.ne.s32.totalorder %s96, %s97
      %p109 = scmp.eq.s32.totalorder %s22, 1
      %p110 = por %p108, %p109
      %p112 = scmp.ne.s32.totalorder %s97, %s111
      %p113 = scmp.eq.s32.totalorder %s22, 0
      %p114 = por %p112, %p113
      %s115 = ssub.s32 %s23, %s42
      %s116 = ssub.s32 %s24, %s38
      %s117 = sor.u32 %s115, %s116
      %s118 = ssub.s32 %s25, %s34
      %s119 = sor.u32 %s117, %s118
      %p120 = scmp.eq.s32.totalorder %s119, 0
      %s122 = sadd.s32 %s121, 1
      %s123 = scalar_select %p120, %s121, %s122
      %p126 = pneg %p120
      %p127 = scmp.eq.s32.totalorder %s16, 1
      %p128 = por %p126, %p127
      %p129 = scmp.ne.s32.totalorder %s121, %s124
      %p130 = scmp.eq.s32.totalorder %s16, 0
      %p131 = por %p129, %p130
      %p132 = scmp.ne.s32.totalorder %s121, %s124
      %p133 = scmp.eq.s32.totalorder %s21, 1
      %p134 = por %p132, %p133
      %p135 = scmp.ne.s32.totalorder %s124, %s125
      %p136 = scmp.eq.s32.totalorder %s21, 0
      %p137 = por %p135, %p136
      %p138 = scmp.ne.s32.totalorder %s124, %s125
      %p139 = scmp.eq.s32.totalorder %s22, 1
      %p140 = por %p138, %p139
      %p142 = scmp.ne.s32.totalorder %s125, %s141
      %p143 = scmp.eq.s32.totalorder %s22, 0
      %p144 = por %p142, %p143
      %p145 = scmp.le.s32.totalorder 1, %s16
      %p146 = scmp.lt.s32.totalorder %s16, 3
      %p147 = pnand %p145, %p146
      %p148 = pneg %p147
      // Predicated region
      $region9: #{tpu_custom_call.1} parent=5 // pred_check
        _
      $region10: #{tpu_custom_call.1} parent=5 // pred_check_branch
        %150 = sbr.rel (%p147) target = $region12
      $region11: #{tpu_custom_call.1} parent=5 // pred_region
        %s151 = ssub.s32 %s16, 1
        // Predicated region
        $region13: #{tpu_custom_call.1} parent=11 // pred_check
          %p152 = pneg %p86
        $region14: #{tpu_custom_call.1} parent=11 // pred_check_branch
          %154 = sbr.rel (%p152) target = $region16
        $region15: #{tpu_custom_call.1} parent=11 // pred_region
          %s156 = ssub.s32 2048, 2048
          %157 = vsyncadd [#allocation6], %s156
          %s158 = sshll.u32 [#allocation5], 4
          %s159 = int_to_ptr.vmem [resolvable:$true] %s158
          %164 = dma.hbm_to_vmem [thread:$0]  %s1, 2048, %s159, [#allocation6], 128, 128, 8
        $region16: #{tpu_custom_call.1} parent=11 // pred_fallthru
          _
        // Predicated region
        $region17: #{tpu_custom_call.1} parent=11 // pred_check
          %p165 = pneg %p107
        $region18: #{tpu_custom_call.1} parent=11 // pred_check_branch
          %167 = sbr.rel (%p165) target = $region20
        $region19: #{tpu_custom_call.1} parent=11 // pred_region
          %s169 = ssub.s32 2048, 2048
          %170 = vsyncadd [#allocation6], %s169
          %s171 = sshll.u32 [#allocation7], 4
          %s172 = int_to_ptr.vmem [resolvable:$true] %s171
          %177 = dma.hbm_to_vmem [thread:$0]  %s2, 2048, %s172, [#allocation6], 128, 128, 8
        $region20: #{tpu_custom_call.1} parent=11 // pred_fallthru
          _
      $region12: #{tpu_custom_call.1} parent=5 // pred_fallthru
        _
      %p178 = scmp.lt.s32.totalorder %s16, 2
      // Predicated region
      $region21: #{tpu_custom_call.1} parent=5 // pred_check
        %p179 = pneg %p178
      $region22: #{tpu_custom_call.1} parent=5 // pred_check_branch
        %181 = sbr.rel (%p179) target = $region24
      $region23: #{tpu_custom_call.1} parent=5 // pred_region
        // Predicated region
        $region25: #{tpu_custom_call.1} parent=23 // pred_check
          %p182 = pneg %p59
        $region26: #{tpu_custom_call.1} parent=23 // pred_check_branch
          %184 = sbr.rel (%p182) target = $region28
        $region27: #{tpu_custom_call.1} parent=23 // pred_region
          %s185 = sand.u32 %s49, 1
          %s186 = scalar_lea.sflag [#allocation3], %s185
          %s187 = sand.u32 %s49, 1
          %s188 = smul.addr %s187, 384
          %s189 = scalar_lea.vmem [#allocation2], %s188
          %s190 = smul.u32 16, %s24
          %s192 = ssub.s32 6144, 6144
          %193 = vsyncadd %s186, %s192
          %s194 = sadd.s32 %s25, %s190
          %s195 = smul.addr %s23, 48
          %s196 = sadd.s32 %s194, %s195
          %s197 = smul.addr %s196, 128
          %s198 = scalar_lea.hbm %s0, %s197
          %s199 = sshll.u32 %s189, 4
          %s200 = int_to_ptr.vmem [resolvable:$true] %s199
          %205 = dma.hbm_to_vmem [thread:$0]  %s198, 6144, %s200, %s186, 128, 128, 8
        $region28: #{tpu_custom_call.1} parent=23 // pred_fallthru
          _
      $region24: #{tpu_custom_call.1} parent=5 // pred_fallthru
        _
      %p206 = scmp.le.s32.totalorder 1, %s16
      %p207 = scmp.lt.s32.totalorder %s16, 3
      %p208 = pnand %p206, %p207
      %p209 = pneg %p208
      // Predicated region
      $region29: #{tpu_custom_call.1} parent=5 // pred_check
        _
      $region30: #{tpu_custom_call.1} parent=5 // pred_check_branch
        %211 = sbr.rel (%p208) target = $region32
      $region31: #{tpu_custom_call.1} parent=5 // pred_region
        %s212 = ssub.s32 %s16, 1
        %s213 = sand.u32 %s52, 1
        %s214 = scalar_lea.sflag [#allocation3], %s213
        %s215 = sand.u32 %s52, 1
        %s216 = smul.addr %s215, 384
        %s217 = scalar_lea.vmem [#allocation2], %s216
        // Predicated region
        $region33: #{tpu_custom_call.1} parent=31 // pred_check
          %p218 = pneg %p65
        $region34: #{tpu_custom_call.1} parent=31 // pred_check_branch
          %220 = sbr.rel (%p218) target = $region36
        $region35: #{tpu_custom_call.1} parent=31 // pred_region
          %221 = dma.done %s214, 6144
        $region36: #{tpu_custom_call.1} parent=31 // pred_fallthru
          _
        // Predicated region
        $region37: #{tpu_custom_call.1} parent=31 // pred_check
          %p222 = pneg %p86
        $region38: #{tpu_custom_call.1} parent=31 // pred_check_branch
          %224 = sbr.rel (%p222) target = $region40
        $region39: #{tpu_custom_call.1} parent=31 // pred_region
          %225 = dma.done [#allocation6], 2048
        $region40: #{tpu_custom_call.1} parent=31 // pred_fallthru
          _
        // Predicated region
        $region41: #{tpu_custom_call.1} parent=31 // pred_check
          %p226 = pneg %p107
        $region42: #{tpu_custom_call.1} parent=31 // pred_check_branch
          %228 = sbr.rel (%p226) target = $region44
        $region43: #{tpu_custom_call.1} parent=31 // pred_region
          %229 = dma.done [#allocation6], 2048
        $region44: #{tpu_custom_call.1} parent=31 // pred_fallthru
          _
        %s230 = sand.u32 %s52, 1
        %s231 = scalar_lea.sflag [#allocation3], %s230
        %s232 = sand.u32 %s52, 1
        %s233 = smul.addr %s232, 384
        %s234 = scalar_lea.vmem [#allocation2], %s233
        %p235 = pneg %p65
        %p236 = pneg %p62
        %p237 = pneg %p86
        %p238 = pneg %p83
        %p239 = pneg %p107
        %p240 = pneg %p104
        %p241 = pneg %p137
        %p242 = pneg %p134
        %s243 = sand.u32 %s124, 1
        %s244 = scalar_lea.sflag [#allocation4], %s243
        %s245 = sand.u32 %s124, 1
        %s246 = smul.addr %s245, 384
        %s247 = scalar_lea.vmem [#allocation8], %s246
        %s248 = smul.u32 16, %s27
        %s249 = smul.u32 16, %s27
        %v250 = vld [vmem:[%s217] sm:$0xff]
        %v251 = vld [vmem:[%s217 + $0x8] sm:$0xff]
        %v252 = vld [vmem:[%s217 + $0x10] sm:$0xff]
        %v253 = vld [vmem:[%s217 + $0x18] sm:$0xff]
        %v254 = vld [vmem:[%s217 + $0x20] sm:$0xff]
        %v255 = vld [vmem:[%s217 + $0x28] sm:$0xff]
        %v256 = vld [vmem:[%s217 + $0x30] sm:$0xff]
        %v257 = vld [vmem:[%s217 + $0x38] sm:$0xff]
        %v258 = vld [vmem:[%s217 + $0x40] sm:$0xff]
        %v259 = vld [vmem:[%s217 + $0x48] sm:$0xff]
        %v260 = vld [vmem:[%s217 + $0x50] sm:$0xff]
        %v261 = vld [vmem:[%s217 + $0x58] sm:$0xff]
        %v262 = vld [vmem:[%s217 + $0x60] sm:$0xff]
        %v263 = vld [vmem:[%s217 + $0x68] sm:$0xff]
        %v264 = vld [vmem:[%s217 + $0x70] sm:$0xff]
        %v265 = vld [vmem:[%s217 + $0x78] sm:$0xff]
        %v266 = vld [vmem:[%s217 + $0x80] sm:$0xff]
        %v267 = vld [vmem:[%s217 + $0x88] sm:$0xff]
        %v268 = vld [vmem:[%s217 + $0x90] sm:$0xff]
        %v269 = vld [vmem:[%s217 + $0x98] sm:$0xff]
        %v270 = vld [vmem:[%s217 + $0xa0] sm:$0xff]
        %v271 = vld [vmem:[%s217 + $0xa8] sm:$0xff]
        %v272 = vld [vmem:[%s217 + $0xb0] sm:$0xff]
        %v273 = vld [vmem:[%s217 + $0xb8] sm:$0xff]
        %v274 = vld [vmem:[%s217 + $0xc0] sm:$0xff]
        %v275 = vld [vmem:[%s217 + $0xc8] sm:$0xff]
        %v276 = vld [vmem:[%s217 + $0xd0] sm:$0xff]
        %v277 = vld [vmem:[%s217 + $0xd8] sm:$0xff]
        %v278 = vld [vmem:[%s217 + $0xe0] sm:$0xff]
        %v279 = vld [vmem:[%s217 + $0xe8] sm:$0xff]
        %v280 = vld [vmem:[%s217 + $0xf0] sm:$0xff]
        %v281 = vld [vmem:[%s217 + $0xf8] sm:$0xff]
        %v282 = vld [vmem:[%s217 + $0x100] sm:$0xff]
        %v283 = vld [vmem:[%s217 + $0x108] sm:$0xff]
        %v284 = vld [vmem:[%s217 + $0x110] sm:$0xff]
        %v285 = vld [vmem:[%s217 + $0x118] sm:$0xff]
        %v286 = vld [vmem:[%s217 + $0x120] sm:$0xff]
        %v287 = vld [vmem:[%s217 + $0x128] sm:$0xff]
        %v288 = vld [vmem:[%s217 + $0x130] sm:$0xff]
        %v289 = vld [vmem:[%s217 + $0x138] sm:$0xff]
        %v290 = vld [vmem:[%s217 + $0x140] sm:$0xff]
        %v291 = vld [vmem:[%s217 + $0x148] sm:$0xff]
        %v292 = vld [vmem:[%s217 + $0x150] sm:$0xff]
        %v293 = vld [vmem:[%s217 + $0x158] sm:$0xff]
        %v294 = vld [vmem:[%s217 + $0x160] sm:$0xff]
        %v295 = vld [vmem:[%s217 + $0x168] sm:$0xff]
        %v296 = vld [vmem:[%s217 + $0x170] sm:$0xff]
        %v297 = vld [vmem:[%s217 + $0x178] sm:$0xff]
        %v298 = vmax.f32 %v250, -1.0
        %v299 = vmax.f32 %v251, -1.0
        %v300 = vmax.f32 %v252, -1.0
        %v301 = vmax.f32 %v253, -1.0
        %v302 = vmax.f32 %v254, -1.0
        %v303 = vmax.f32 %v255, -1.0
        %v304 = vmax.f32 %v256, -1.0
        %v305 = vmax.f32 %v257, -1.0
        %v306 = vmax.f32 %v258, -1.0
        %v307 = vmax.f32 %v259, -1.0
        %v308 = vmax.f32 %v260, -1.0
        %v309 = vmax.f32 %v261, -1.0
        %v310 = vmax.f32 %v262, -1.0
        %v311 = vmax.f32 %v263, -1.0
        %v312 = vmax.f32 %v264, -1.0
        %v313 = vmax.f32 %v265, -1.0
        %v314 = vmax.f32 %v266, -1.0
        %v315 = vmax.f32 %v267, -1.0
        %v316 = vmax.f32 %v268, -1.0
        %v317 = vmax.f32 %v269, -1.0
        %v318 = vmax.f32 %v270, -1.0
        %v319 = vmax.f32 %v271, -1.0
        %v320 = vmax.f32 %v272, -1.0
        %v321 = vmax.f32 %v273, -1.0
        %v322 = vmax.f32 %v274, -1.0
        %v323 = vmax.f32 %v275, -1.0
        %v324 = vmax.f32 %v276, -1.0
        %v325 = vmax.f32 %v277, -1.0
        %v326 = vmax.f32 %v278, -1.0
        %v327 = vmax.f32 %v279, -1.0
        %v328 = vmax.f32 %v280, -1.0
        %v329 = vmax.f32 %v281, -1.0
        %v330 = vmax.f32 %v282, -1.0
        %v331 = vmax.f32 %v283, -1.0
        %v332 = vmax.f32 %v284, -1.0
        %v333 = vmax.f32 %v285, -1.0
        %v334 = vmax.f32 %v286, -1.0
        %v335 = vmax.f32 %v287, -1.0
        %v336 = vmax.f32 %v288, -1.0
        %v337 = vmax.f32 %v289, -1.0
        %v338 = vmax.f32 %v290, -1.0
        %v339 = vmax.f32 %v291, -1.0
        %v340 = vmax.f32 %v292, -1.0
        %v341 = vmax.f32 %v293, -1.0
        %v342 = vmax.f32 %v294, -1.0
        %v343 = vmax.f32 %v295, -1.0
        %v344 = vmax.f32 %v296, -1.0
        %v345 = vmax.f32 %v297, -1.0
        %v346 = vmin.f32 %v298, 1.0
        %v347 = vmin.f32 %v299, 1.0
        %v348 = vmin.f32 %v300, 1.0
        %v349 = vmin.f32 %v301, 1.0
        %v350 = vmin.f32 %v302, 1.0
        %v351 = vmin.f32 %v303, 1.0
        %v352 = vmin.f32 %v304, 1.0
        %v353 = vmin.f32 %v305, 1.0
        %v354 = vmin.f32 %v306, 1.0
        %v355 = vmin.f32 %v307, 1.0
        %v356 = vmin.f32 %v308, 1.0
        %v357 = vmin.f32 %v309, 1.0
        %v358 = vmin.f32 %v310, 1.0
        %v359 = vmin.f32 %v311, 1.0
        %v360 = vmin.f32 %v312, 1.0
        %v361 = vmin.f32 %v313, 1.0
        %v362 = vmin.f32 %v314, 1.0
        %v363 = vmin.f32 %v315, 1.0
        %v364 = vmin.f32 %v316, 1.0
        %v365 = vmin.f32 %v317, 1.0
        %v366 = vmin.f32 %v318, 1.0
        %v367 = vmin.f32 %v319, 1.0
        %v368 = vmin.f32 %v320, 1.0
        %v369 = vmin.f32 %v321, 1.0
        %v370 = vmin.f32 %v322, 1.0
        %v371 = vmin.f32 %v323, 1.0
        %v372 = vmin.f32 %v324, 1.0
        %v373 = vmin.f32 %v325, 1.0
        %v374 = vmin.f32 %v326, 1.0
        %v375 = vmin.f32 %v327, 1.0
        %v376 = vmin.f32 %v328, 1.0
        %v377 = vmin.f32 %v329, 1.0
        %v378 = vmin.f32 %v330, 1.0
        %v379 = vmin.f32 %v331, 1.0
        %v380 = vmin.f32 %v332, 1.0
        %v381 = vmin.f32 %v333, 1.0
        %v382 = vmin.f32 %v334, 1.0
        %v383 = vmin.f32 %v335, 1.0
        %v384 = vmin.f32 %v336, 1.0
        %v385 = vmin.f32 %v337, 1.0
        %v386 = vmin.f32 %v338, 1.0
        %v387 = vmin.f32 %v339, 1.0
        %v388 = vmin.f32 %v340, 1.0
        %v389 = vmin.f32 %v341, 1.0
        %v390 = vmin.f32 %v342, 1.0
        %v391 = vmin.f32 %v343, 1.0
        %v392 = vmin.f32 %v344, 1.0
        %v393 = vmin.f32 %v345, 1.0
        %v394 = vadd.f32 %v346, 1.0
        %v395 = vadd.f32 %v347, 1.0
        %v396 = vadd.f32 %v348, 1.0
        %v397 = vadd.f32 %v349, 1.0
        %v398 = vadd.f32 %v350, 1.0
        %v399 = vadd.f32 %v351, 1.0
        %v400 = vadd.f32 %v352, 1.0
        %v401 = vadd.f32 %v353, 1.0
        %v402 = vadd.f32 %v354, 1.0
        %v403 = vadd.f32 %v355, 1.0
        %v404 = vadd.f32 %v356, 1.0
        %v405 = vadd.f32 %v357, 1.0
        %v406 = vadd.f32 %v358, 1.0
        %v407 = vadd.f32 %v359, 1.0
        %v408 = vadd.f32 %v360, 1.0
        %v409 = vadd.f32 %v361, 1.0
        %v410 = vadd.f32 %v362, 1.0
        %v411 = vadd.f32 %v363, 1.0
        %v412 = vadd.f32 %v364, 1.0
        %v413 = vadd.f32 %v365, 1.0
        %v414 = vadd.f32 %v366, 1.0
        %v415 = vadd.f32 %v367, 1.0
        %v416 = vadd.f32 %v368, 1.0
        %v417 = vadd.f32 %v369, 1.0
        %v418 = vadd.f32 %v370, 1.0
        %v419 = vadd.f32 %v371, 1.0
        %v420 = vadd.f32 %v372, 1.0
        %v421 = vadd.f32 %v373, 1.0
        %v422 = vadd.f32 %v374, 1.0
        %v423 = vadd.f32 %v375, 1.0
        %v424 = vadd.f32 %v376, 1.0
        %v425 = vadd.f32 %v377, 1.0
        %v426 = vadd.f32 %v378, 1.0
        %v427 = vadd.f32 %v379, 1.0
        %v428 = vadd.f32 %v380, 1.0
        %v429 = vadd.f32 %v381, 1.0
        %v430 = vadd.f32 %v382, 1.0
        %v431 = vadd.f32 %v383, 1.0
        %v432 = vadd.f32 %v384, 1.0
        %v433 = vadd.f32 %v385, 1.0
        %v434 = vadd.f32 %v386, 1.0
        %v435 = vadd.f32 %v387, 1.0
        %v436 = vadd.f32 %v388, 1.0
        %v437 = vadd.f32 %v389, 1.0
        %v438 = vadd.f32 %v390, 1.0
        %v439 = vadd.f32 %v391, 1.0
        %v440 = vadd.f32 %v392, 1.0
        %v441 = vadd.f32 %v393, 1.0
        %v442 = vmul.f32 %v394, 127.5
        %v443 = vmul.f32 %v395, 127.5
        %v444 = vmul.f32 %v396, 127.5
        %v445 = vmul.f32 %v397, 127.5
        %v446 = vmul.f32 %v398, 127.5
        %v447 = vmul.f32 %v399, 127.5
        %v448 = vmul.f32 %v400, 127.5
        %v449 = vmul.f32 %v401, 127.5
        %v450 = vmul.f32 %v402, 127.5
        %v451 = vmul.f32 %v403, 127.5
        %v452 = vmul.f32 %v404, 127.5
        %v453 = vmul.f32 %v405, 127.5
        %v454 = vmul.f32 %v406, 127.5
        %v455 = vmul.f32 %v407, 127.5
        %v456 = vmul.f32 %v408, 127.5
        %v457 = vmul.f32 %v409, 127.5
        %v458 = vmul.f32 %v410, 127.5
        %v459 = vmul.f32 %v411, 127.5
        %v460 = vmul.f32 %v412, 127.5
        %v461 = vmul.f32 %v413, 127.5
        %v462 = vmul.f32 %v414, 127.5
        %v463 = vmul.f32 %v415, 127.5
        %v464 = vmul.f32 %v416, 127.5
        %v465 = vmul.f32 %v417, 127.5
        %v466 = vmul.f32 %v418, 127.5
        %v467 = vmul.f32 %v419, 127.5
        %v468 = vmul.f32 %v420, 127.5
        %v469 = vmul.f32 %v421, 127.5
        %v470 = vmul.f32 %v422, 127.5
        %v471 = vmul.f32 %v423, 127.5
        %v472 = vmul.f32 %v424, 127.5
        %v473 = vmul.f32 %v425, 127.5
        %v474 = vmul.f32 %v426, 127.5
        %v475 = vmul.f32 %v427, 127.5
        %v476 = vmul.f32 %v428, 127.5
        %v477 = vmul.f32 %v429, 127.5
        %v478 = vmul.f32 %v430, 127.5
        %v479 = vmul.f32 %v431, 127.5
        %v480 = vmul.f32 %v432, 127.5
        %v481 = vmul.f32 %v433, 127.5
        %v482 = vmul.f32 %v434, 127.5
        %v483 = vmul.f32 %v435, 127.5
        %v484 = vmul.f32 %v436, 127.5
        %v485 = vmul.f32 %v437, 127.5
        %v486 = vmul.f32 %v438, 127.5
        %v487 = vmul.f32 %v439, 127.5
        %v488 = vmul.f32 %v440, 127.5
        %v489 = vmul.f32 %v441, 127.5
        %v490 = vmul.f32 %v442, 0.299
        %v491 = vmul.f32 %v443, 0.299
        %v492 = vmul.f32 %v444, 0.299
        %v493 = vmul.f32 %v445, 0.299
        %v494 = vmul.f32 %v446, 0.299
        %v495 = vmul.f32 %v447, 0.299
        %v496 = vmul.f32 %v448, 0.299
        %v497 = vmul.f32 %v449, 0.299
        %v498 = vmul.f32 %v450, 0.299
        %v499 = vmul.f32 %v451, 0.299
        %v500 = vmul.f32 %v452, 0.299
        %v501 = vmul.f32 %v453, 0.299
        %v502 = vmul.f32 %v454, 0.299
        %v503 = vmul.f32 %v455, 0.299
        %v504 = vmul.f32 %v456, 0.299
        %v505 = vmul.f32 %v457, 0.299
        %v506 = vmul.f32 %v458, 0.587
        %v507 = vmul.f32 %v459, 0.587
        %v508 = vmul.f32 %v460, 0.587
        %v509 = vmul.f32 %v461, 0.587
        %v510 = vmul.f32 %v462, 0.587
        %v511 = vmul.f32 %v463, 0.587
        %v512 = vmul.f32 %v464, 0.587
        %v513 = vmul.f32 %v465, 0.587
        %v514 = vmul.f32 %v466, 0.587
        %v515 = vmul.f32 %v467, 0.587
        %v516 = vmul.f32 %v468, 0.587
        %v517 = vmul.f32 %v469, 0.587
        %v518 = vmul.f32 %v470, 0.587
        %v519 = vmul.f32 %v471, 0.587
        %v520 = vmul.f32 %v472, 0.587
        %v521 = vmul.f32 %v473, 0.587
        %v522 = vadd.f32 %v490, %v506
        %v523 = vadd.f32 %v491, %v507
        %v524 = vadd.f32 %v492, %v508
        %v525 = vadd.f32 %v493, %v509
        %v526 = vadd.f32 %v494, %v510
        %v527 = vadd.f32 %v495, %v511
        %v528 = vadd.f32 %v496, %v512
        %v529 = vadd.f32 %v497, %v513
        %v530 = vadd.f32 %v498, %v514
        %v531 = vadd.f32 %v499, %v515
        %v532 = vadd.f32 %v500, %v516
        %v533 = vadd.f32 %v501, %v517
        %v534 = vadd.f32 %v502, %v518
        %v535 = vadd.f32 %v503, %v519
        %v536 = vadd.f32 %v504, %v520
        %v537 = vadd.f32 %v505, %v521
        %v538 = vmul.f32 %v474, 0.114
        %v539 = vmul.f32 %v475, 0.114
        %v540 = vmul.f32 %v476, 0.114
        %v541 = vmul.f32 %v477, 0.114
        %v542 = vmul.f32 %v478, 0.114
        %v543 = vmul.f32 %v479, 0.114
        %v544 = vmul.f32 %v480, 0.114
        %v545 = vmul.f32 %v481, 0.114
        %v546 = vmul.f32 %v482, 0.114
        %v547 = vmul.f32 %v483, 0.114
        %v548 = vmul.f32 %v484, 0.114
        %v549 = vmul.f32 %v485, 0.114
        %v550 = vmul.f32 %v486, 0.114
        %v551 = vmul.f32 %v487, 0.114
        %v552 = vmul.f32 %v488, 0.114
        %v553 = vmul.f32 %v489, 0.114
        %v554 = vadd.f32 %v522, %v538
        %v555 = vadd.f32 %v523, %v539
        %v556 = vadd.f32 %v524, %v540
        %v557 = vadd.f32 %v525, %v541
        %v558 = vadd.f32 %v526, %v542
        %v559 = vadd.f32 %v527, %v543
        %v560 = vadd.f32 %v528, %v544
        %v561 = vadd.f32 %v529, %v545
        %v562 = vadd.f32 %v530, %v546
        %v563 = vadd.f32 %v531, %v547
        %v564 = vadd.f32 %v532, %v548
        %v565 = vadd.f32 %v533, %v549
        %v566 = vadd.f32 %v534, %v550
        %v567 = vadd.f32 %v535, %v551
        %v568 = vadd.f32 %v536, %v552
        %v569 = vadd.f32 %v537, %v553
        %v570 = vmul.f32 %v442, -0.1687
        %v571 = vmul.f32 %v443, -0.1687
        %v572 = vmul.f32 %v444, -0.1687
        %v573 = vmul.f32 %v445, -0.1687
        %v574 = vmul.f32 %v446, -0.1687
        %v575 = vmul.f32 %v447, -0.1687
        %v576 = vmul.f32 %v448, -0.1687
        %v577 = vmul.f32 %v449, -0.1687
        %v578 = vmul.f32 %v450, -0.1687
        %v579 = vmul.f32 %v451, -0.1687
        %v580 = vmul.f32 %v452, -0.1687
        %v581 = vmul.f32 %v453, -0.1687
        %v582 = vmul.f32 %v454, -0.1687
        %v583 = vmul.f32 %v455, -0.1687
        %v584 = vmul.f32 %v456, -0.1687
        %v585 = vmul.f32 %v457, -0.1687
        %v586 = vmul.f32 %v458, 0.3313
        %v587 = vmul.f32 %v459, 0.3313
        %v588 = vmul.f32 %v460, 0.3313
        %v589 = vmul.f32 %v461, 0.3313
        %v590 = vmul.f32 %v462, 0.3313
        %v591 = vmul.f32 %v463, 0.3313
        %v592 = vmul.f32 %v464, 0.3313
        %v593 = vmul.f32 %v465, 0.3313
        %v594 = vmul.f32 %v466, 0.3313
        %v595 = vmul.f32 %v467, 0.3313
        %v596 = vmul.f32 %v468, 0.3313
        %v597 = vmul.f32 %v469, 0.3313
        %v598 = vmul.f32 %v470, 0.3313
        %v599 = vmul.f32 %v471, 0.3313
        %v600 = vmul.f32 %v472, 0.3313
        %v601 = vmul.f32 %v473, 0.3313
        %v602 = vsub.f32 %v570, %v586
        %v603 = vsub.f32 %v571, %v587
        %v604 = vsub.f32 %v572, %v588
        %v605 = vsub.f32 %v573, %v589
        %v606 = vsub.f32 %v574, %v590
        %v607 = vsub.f32 %v575, %v591
        %v608 = vsub.f32 %v576, %v592
        %v609 = vsub.f32 %v577, %v593
        %v610 = vsub.f32 %v578, %v594
        %v611 = vsub.f32 %v579, %v595
        %v612 = vsub.f32 %v580, %v596
        %v613 = vsub.f32 %v581, %v597
        %v614 = vsub.f32 %v582, %v598
        %v615 = vsub.f32 %v583, %v599
        %v616 = vsub.f32 %v584, %v600
        %v617 = vsub.f32 %v585, %v601
        %v618 = vmul.f32 %v474, 0.5
        %v619 = vmul.f32 %v475, 0.5
        %v620 = vmul.f32 %v476, 0.5
        %v621 = vmul.f32 %v477, 0.5
        %v622 = vmul.f32 %v478, 0.5
        %v623 = vmul.f32 %v479, 0.5
        %v624 = vmul.f32 %v480, 0.5
        %v625 = vmul.f32 %v481, 0.5
        %v626 = vmul.f32 %v482, 0.5
        %v627 = vmul.f32 %v483, 0.5
        %v628 = vmul.f32 %v484, 0.5
        %v629 = vmul.f32 %v485, 0.5
        %v630 = vmul.f32 %v486, 0.5
        %v631 = vmul.f32 %v487, 0.5
        %v632 = vmul.f32 %v488, 0.5
        %v633 = vmul.f32 %v489, 0.5
        %v634 = vadd.f32 %v602, %v618
        %v635 = vadd.f32 %v603, %v619
        %v636 = vadd.f32 %v604, %v620
        %v637 = vadd.f32 %v605, %v621
        %v638 = vadd.f32 %v606, %v622
        %v639 = vadd.f32 %v607, %v623
        %v640 = vadd.f32 %v608, %v624
        %v641 = vadd.f32 %v609, %v625
        %v642 = vadd.f32 %v610, %v626
        %v643 = vadd.f32 %v611, %v627
        %v644 = vadd.f32 %v612, %v628
        %v645 = vadd.f32 %v613, %v629
        %v646 = vadd.f32 %v614, %v630
        %v647 = vadd.f32 %v615, %v631
        %v648 = vadd.f32 %v616, %v632
        %v649 = vadd.f32 %v617, %v633
        %v650 = vmul.f32 %v442, 0.5
        %v651 = vmul.f32 %v443, 0.5
        %v652 = vmul.f32 %v444, 0.5
        %v653 = vmul.f32 %v445, 0.5
        %v654 = vmul.f32 %v446, 0.5
        %v655 = vmul.f32 %v447, 0.5
        %v656 = vmul.f32 %v448, 0.5
        %v657 = vmul.f32 %v449, 0.5
        %v658 = vmul.f32 %v450, 0.5
        %v659 = vmul.f32 %v451, 0.5
        %v660 = vmul.f32 %v452, 0.5
        %v661 = vmul.f32 %v453, 0.5
        %v662 = vmul.f32 %v454, 0.5
        %v663 = vmul.f32 %v455, 0.5
        %v664 = vmul.f32 %v456, 0.5
        %v665 = vmul.f32 %v457, 0.5
        %v666 = vmul.f32 %v458, 0.4187
        %v667 = vmul.f32 %v459, 0.4187
        %v668 = vmul.f32 %v460, 0.4187
        %v669 = vmul.f32 %v461, 0.4187
        %v670 = vmul.f32 %v462, 0.4187
        %v671 = vmul.f32 %v463, 0.4187
        %v672 = vmul.f32 %v464, 0.4187
        %v673 = vmul.f32 %v465, 0.4187
        %v674 = vmul.f32 %v466, 0.4187
        %v675 = vmul.f32 %v467, 0.4187
        %v676 = vmul.f32 %v468, 0.4187
        %v677 = vmul.f32 %v469, 0.4187
        %v678 = vmul.f32 %v470, 0.4187
        %v679 = vmul.f32 %v471, 0.4187
        %v680 = vmul.f32 %v472, 0.4187
        %v681 = vmul.f32 %v473, 0.4187
        %v682 = vsub.f32 %v650, %v666
        %v683 = vsub.f32 %v651, %v667
        %v684 = vsub.f32 %v652, %v668
        %v685 = vsub.f32 %v653, %v669
        %v686 = vsub.f32 %v654, %v670
        %v687 = vsub.f32 %v655, %v671
        %v688 = vsub.f32 %v656, %v672
        %v689 = vsub.f32 %v657, %v673
        %v690 = vsub.f32 %v658, %v674
        %v691 = vsub.f32 %v659, %v675
        %v692 = vsub.f32 %v660, %v676
        %v693 = vsub.f32 %v661, %v677
        %v694 = vsub.f32 %v662, %v678
        %v695 = vsub.f32 %v663, %v679
        %v696 = vsub.f32 %v664, %v680
        %v697 = vsub.f32 %v665, %v681
        %v698 = vmul.f32 %v474, 0.0813
        %v699 = vmul.f32 %v475, 0.0813
        %v700 = vmul.f32 %v476, 0.0813
        %v701 = vmul.f32 %v477, 0.0813
        %v702 = vmul.f32 %v478, 0.0813
        %v703 = vmul.f32 %v479, 0.0813
        %v704 = vmul.f32 %v480, 0.0813
        %v705 = vmul.f32 %v481, 0.0813
        %v706 = vmul.f32 %v482, 0.0813
        %v707 = vmul.f32 %v483, 0.0813
        %v708 = vmul.f32 %v484, 0.0813
        %v709 = vmul.f32 %v485, 0.0813
        %v710 = vmul.f32 %v486, 0.0813
        %v711 = vmul.f32 %v487, 0.0813
        %v712 = vmul.f32 %v488, 0.0813
        %v713 = vmul.f32 %v489, 0.0813
        %v714 = vsub.f32 %v682, %v698
        %v715 = vsub.f32 %v683, %v699
        %v716 = vsub.f32 %v684, %v700
        %v717 = vsub.f32 %v685, %v701
        %v718 = vsub.f32 %v686, %v702
        %v719 = vsub.f32 %v687, %v703
        %v720 = vsub.f32 %v688, %v704
        %v721 = vsub.f32 %v689, %v705
        %v722 = vsub.f32 %v690, %v706
        %v723 = vsub.f32 %v691, %v707
        %v724 = vsub.f32 %v692, %v708
        %v725 = vsub.f32 %v693, %v709
        %v726 = vsub.f32 %v694, %v710
        %v727 = vsub.f32 %v695, %v711
        %v728 = vsub.f32 %v696, %v712
        %v729 = vsub.f32 %v697, %v713
        %v730 = vld [vmem:[#allocation5] sm:$0xff]
        %v731 = vld [vmem:[#allocation5 + $0x8] sm:$0xff]
        %v732 = vld [vmem:[#allocation5 + $0x10] sm:$0xff]
        %v733 = vld [vmem:[#allocation5 + $0x18] sm:$0xff]
        %v734 = vld [vmem:[#allocation5 + $0x20] sm:$0xff]
        %v735 = vld [vmem:[#allocation5 + $0x28] sm:$0xff]
        %v736 = vld [vmem:[#allocation5 + $0x30] sm:$0xff]
        %v737 = vld [vmem:[#allocation5 + $0x38] sm:$0xff]
        %v738 = vld [vmem:[#allocation5 + $0x40] sm:$0xff]
        %v739 = vld [vmem:[#allocation5 + $0x48] sm:$0xff]
        %v740 = vld [vmem:[#allocation5 + $0x50] sm:$0xff]
        %v741 = vld [vmem:[#allocation5 + $0x58] sm:$0xff]
        %v742 = vld [vmem:[#allocation5 + $0x60] sm:$0xff]
        %v743 = vld [vmem:[#allocation5 + $0x68] sm:$0xff]
        %v744 = vld [vmem:[#allocation5 + $0x70] sm:$0xff]
        %v745 = vld [vmem:[#allocation5 + $0x78] sm:$0xff]
        %v746 = vld [vmem:[#allocation7] sm:$0xff]
        %v747 = vld [vmem:[#allocation7 + $0x8] sm:$0xff]
        %v748 = vld [vmem:[#allocation7 + $0x10] sm:$0xff]
        %v749 = vld [vmem:[#allocation7 + $0x18] sm:$0xff]
        %v750 = vld [vmem:[#allocation7 + $0x20] sm:$0xff]
        %v751 = vld [vmem:[#allocation7 + $0x28] sm:$0xff]
        %v752 = vld [vmem:[#allocation7 + $0x30] sm:$0xff]
        %v753 = vld [vmem:[#allocation7 + $0x38] sm:$0xff]
        %v754 = vld [vmem:[#allocation7 + $0x40] sm:$0xff]
        %v755 = vld [vmem:[#allocation7 + $0x48] sm:$0xff]
        %v756 = vld [vmem:[#allocation7 + $0x50] sm:$0xff]
        %v757 = vld [vmem:[#allocation7 + $0x58] sm:$0xff]
        %v758 = vld [vmem:[#allocation7 + $0x60] sm:$0xff]
        %v759 = vld [vmem:[#allocation7 + $0x68] sm:$0xff]
        %v760 = vld [vmem:[#allocation7 + $0x70] sm:$0xff]
        %v761 = vld [vmem:[#allocation7 + $0x78] sm:$0xff]
        %762 = vmatprep.subr.mxu0 %v649
        %763 = vmatpush1.msra.mxu0 %v569
        %764 = vmatprep.subr.mxu0 %v648
        %765 = vmatpush1.msra.mxu0 %v568
        %766 = vmatprep.subr.mxu0 %v647
        %767 = vmatpush1.msra.mxu0 %v567
        %768 = vmatprep.subr.mxu0 %v646
        %769 = vmatpush1.msra.mxu0 %v566
        %770 = vmatprep.subr.mxu0 %v645
        %771 = vmatpush1.msra.mxu0 %v565
        %772 = vmatprep.subr.mxu0 %v644
        %773 = vmatpush1.msra.mxu0 %v564
        %774 = vmatprep.subr.mxu0 %v643
        %775 = vmatpush1.msra.mxu0 %v563
        %776 = vmatprep.subr.mxu0 %v642
        %777 = vmatpush1.msra.mxu0 %v562
        %778 = vmatprep.subr.mxu0 %v641
        %779 = vmatpush1.msra.mxu0 %v561
        %780 = vmatprep.subr.mxu0 %v640
        %781 = vmatpush1.msra.mxu0 %v560
        %782 = vmatprep.subr.mxu0 %v639
        %783 = vmatpush1.msra.mxu0 %v559
        %784 = vmatprep.subr.mxu0 %v638
        %785 = vmatpush1.msra.mxu0 %v558
        %786 = vmatprep.subr.mxu0 %v637
        %787 = vmatpush1.msra.mxu0 %v557
        %788 = vmatprep.subr.mxu0 %v636
        %789 = vmatpush1.msra.mxu0 %v556
        %790 = vmatprep.subr.mxu0 %v635
        %791 = vmatpush1.msra.mxu0 %v555
        %792 = vmatprep.subr.mxu0 %v634
        %793 = vmatpush1.msra.mxu0 %v554
        %794 = vmatprep.subr.mxu0 0.0
        %795 = vmatpush2.msra.mxu0 0.0
        %796 = vmatprep.subr.mxu0 0.0
        %797 = vmatpush2.msra.mxu0 0.0
        %798 = vmatprep.subr.mxu0 0.0
        %799 = vmatpush2.msra.mxu0 0.0
        %800 = vmatprep.subr.mxu0 0.0
        %801 = vmatpush2.msra.mxu0 0.0
        %802 = vmatprep.subr.mxu0 0.0
        %803 = vmatpush2.msra.mxu0 0.0
        %804 = vmatprep.subr.mxu0 0.0
        %805 = vmatpush2.msra.mxu0 0.0
        %806 = vmatprep.subr.mxu0 0.0
        %807 = vmatpush2.msra.mxu0 0.0
        %808 = vmatprep.subr.mxu0 0.0
        %809 = vmatpush2.msra.mxu0 0.0
        %810 = vmatprep.subr.mxu0 0.0
        %811 = vmatpush2.msra.mxu0 0.0
        %812 = vmatprep.subr.mxu0 0.0
        %813 = vmatpush2.msra.mxu0 0.0
        %814 = vmatprep.subr.mxu0 0.0
        %815 = vmatpush2.msra.mxu0 0.0
        %816 = vmatprep.subr.mxu0 0.0
        %817 = vmatpush2.msra.mxu0 0.0
        %818 = vmatprep.subr.mxu0 0.0
        %819 = vmatpush2.msra.mxu0 0.0
        %820 = vmatprep.subr.mxu0 0.0
        %821 = vmatpush2.msra.mxu0 0.0
        %822 = vmatprep.subr.mxu0 0.0
        %823 = vmatpush2.msra.mxu0 0.0
        %824 = vmatprep.subr.mxu0 0.0
        %825 = vmatpush2.msra.mxu0 0.0
        %826 = vmatprep.mubr.f32.mxu0 0.0
        %827 = vmatmul.mubr.f32.gmra.mxu0 %v730
        %v828 = vpop.f32.mrf.mxu0
        %v829 = vadd.f32 0.0, %v828
        %v830 = vpop.f32.mrf.mxu0
        %v831 = vadd.f32 0.0, %v830
        %832 = vmatprep.mubr.f32.mxu0 0.0
        %833 = vmatmul.mubr.f32.gmra.mxu0 %v731
        %v834 = vpop.f32.mrf.mxu0
        %v835 = vadd.f32 0.0, %v834
        %v836 = vpop.f32.mrf.mxu0
        %v837 = vadd.f32 0.0, %v836
        %838 = vmatprep.mubr.f32.mxu0 0.0
        %839 = vmatmul.mubr.f32.gmra.mxu0 %v732
        %v840 = vpop.f32.mrf.mxu0
        %v841 = vadd.f32 0.0, %v840
        %v842 = vpop.f32.mrf.mxu0
        %v843 = vadd.f32 0.0, %v842
        %844 = vmatprep.mubr.f32.mxu0 0.0
        %845 = vmatmul.mubr.f32.gmra.mxu0 %v733
        %v846 = vpop.f32.mrf.mxu0
        %v847 = vadd.f32 0.0, %v846
        %v848 = vpop.f32.mrf.mxu0
        %v849 = vadd.f32 0.0, %v848
        %850 = vmatprep.mubr.f32.mxu0 0.0
        %851 = vmatmul.mubr.f32.gmra.mxu0 %v734
        %v852 = vpop.f32.mrf.mxu0
        %v853 = vadd.f32 0.0, %v852
        %v854 = vpop.f32.mrf.mxu0
        %v855 = vadd.f32 0.0, %v854
        %856 = vmatprep.mubr.f32.mxu0 0.0
        %857 = vmatmul.mubr.f32.gmra.mxu0 %v735
        %v858 = vpop.f32.mrf.mxu0
        %v859 = vadd.f32 0.0, %v858
        %v860 = vpop.f32.mrf.mxu0
        %v861 = vadd.f32 0.0, %v860
        %862 = vmatprep.mubr.f32.mxu0 0.0
        %863 = vmatmul.mubr.f32.gmra.mxu0 %v736
        %v864 = vpop.f32.mrf.mxu0
        %v865 = vadd.f32 0.0, %v864
        %v866 = vpop.f32.mrf.mxu0
        %v867 = vadd.f32 0.0, %v866
        %868 = vmatprep.mubr.f32.mxu0 0.0
        %869 = vmatmul.mubr.f32.gmra.mxu0 %v737
        %v870 = vpop.f32.mrf.mxu0
        %v871 = vadd.f32 0.0, %v870
        %v872 = vpop.f32.mrf.mxu0
        %v873 = vadd.f32 0.0, %v872
        %874 = vmatprep.mubr.f32.mxu0 0.0
        %875 = vmatmul.mubr.f32.gmra.mxu0 %v738
        %v876 = vpop.f32.mrf.mxu0
        %v877 = vadd.f32 0.0, %v876
        %v878 = vpop.f32.mrf.mxu0
        %v879 = vadd.f32 0.0, %v878
        %880 = vmatprep.mubr.f32.mxu0 0.0
        %881 = vmatmul.mubr.f32.gmra.mxu0 %v739
        %v882 = vpop.f32.mrf.mxu0
        %v883 = vadd.f32 0.0, %v882
        %v884 = vpop.f32.mrf.mxu0
        %v885 = vadd.f32 0.0, %v884
        %886 = vmatprep.mubr.f32.mxu0 0.0
        %887 = vmatmul.mubr.f32.gmra.mxu0 %v740
        %v888 = vpop.f32.mrf.mxu0
        %v889 = vadd.f32 0.0, %v888
        %v890 = vpop.f32.mrf.mxu0
        %v891 = vadd.f32 0.0, %v890
        %892 = vmatprep.mubr.f32.mxu0 0.0
        %893 = vmatmul.mubr.f32.gmra.mxu0 %v741
        %v894 = vpop.f32.mrf.mxu0
        %v895 = vadd.f32 0.0, %v894
        %v896 = vpop.f32.mrf.mxu0
        %v897 = vadd.f32 0.0, %v896
        %898 = vmatprep.mubr.f32.mxu0 0.0
        %899 = vmatmul.mubr.f32.gmra.mxu0 %v742
        %v900 = vpop.f32.mrf.mxu0
        %v901 = vadd.f32 0.0, %v900
        %v902 = vpop.f32.mrf.mxu0
        %v903 = vadd.f32 0.0, %v902
        %904 = vmatprep.mubr.f32.mxu0 0.0
        %905 = vmatmul.mubr.f32.gmra.mxu0 %v743
        %v906 = vpop.f32.mrf.mxu0
        %v907 = vadd.f32 0.0, %v906
        %v908 = vpop.f32.mrf.mxu0
        %v909 = vadd.f32 0.0, %v908
        %910 = vmatprep.mubr.f32.mxu0 0.0
        %911 = vmatmul.mubr.f32.gmra.mxu0 %v744
        %v912 = vpop.f32.mrf.mxu0
        %v913 = vadd.f32 0.0, %v912
        %v914 = vpop.f32.mrf.mxu0
        %v915 = vadd.f32 0.0, %v914
        %916 = vmatprep.mubr.f32.mxu0 0.0
        %917 = vmatmul.mubr.f32.gmra.mxu0 %v745
        %v918 = vpop.f32.mrf.mxu0
        %v919 = vadd.f32 0.0, %v918
        %v920 = vpop.f32.mrf.mxu0
        %v921 = vadd.f32 0.0, %v920
        %922 = vdwg.mxu0
        %923 = vmatprep.subr.mxu0 0.0
        %924 = vmatpush1.msra.mxu0 %v729
        %925 = vmatprep.subr.mxu0 0.0
        %926 = vmatpush1.msra.mxu0 %v728
        %927 = vmatprep.subr.mxu0 0.0
        %928 = vmatpush1.msra.mxu0 %v727
        %929 = vmatprep.subr.mxu0 0.0
        %930 = vmatpush1.msra.mxu0 %v726
        %931 = vmatprep.subr.mxu0 0.0
        %932 = vmatpush1.msra.mxu0 %v725
        %933 = vmatprep.subr.mxu0 0.0
        %934 = vmatpush1.msra.mxu0 %v724
        %935 = vmatprep.subr.mxu0 0.0
        %936 = vmatpush1.msra.mxu0 %v723
        %937 = vmatprep.subr.mxu0 0.0
        %938 = vmatpush1.msra.mxu0 %v722
        %939 = vmatprep.subr.mxu0 0.0
        %940 = vmatpush1.msra.mxu0 %v721
        %941 = vmatprep.subr.mxu0 0.0
        %942 = vmatpush1.msra.mxu0 %v720
        %943 = vmatprep.subr.mxu0 0.0
        %944 = vmatpush1.msra.mxu0 %v719
        %945 = vmatprep.subr.mxu0 0.0
        %946 = vmatpush1.msra.mxu0 %v718
        %947 = vmatprep.subr.mxu0 0.0
        %948 = vmatpush1.msra.mxu0 %v717
        %949 = vmatprep.subr.mxu0 0.0
        %950 = vmatpush1.msra.mxu0 %v716
        %951 = vmatprep.subr.mxu0 0.0
        %952 = vmatpush1.msra.mxu0 %v715
        %953 = vmatprep.subr.mxu0 0.0
        %954 = vmatpush1.msra.mxu0 %v714
        %955 = vmatprep.subr.mxu0 0.0
        %956 = vmatpush2.msra.mxu0 0.0
        %957 = vmatprep.subr.mxu0 0.0
        %958 = vmatpush2.msra.mxu0 0.0
        %959 = vmatprep.subr.mxu0 0.0
        %960 = vmatpush2.msra.mxu0 0.0
        %961 = vmatprep.subr.mxu0 0.0
        %962 = vmatpush2.msra.mxu0 0.0
        %963 = vmatprep.subr.mxu0 0.0
        %964 = vmatpush2.msra.mxu0 0.0
        %965 = vmatprep.subr.mxu0 0.0
        %966 = vmatpush2.msra.mxu0 0.0
        %967 = vmatprep.subr.mxu0 0.0
        %968 = vmatpush2.msra.mxu0 0.0
        %969 = vmatprep.subr.mxu0 0.0
        %970 = vmatpush2.msra.mxu0 0.0
        %971 = vmatprep.subr.mxu0 0.0
        %972 = vmatpush2.msra.mxu0 0.0
        %973 = vmatprep.subr.mxu0 0.0
        %974 = vmatpush2.msra.mxu0 0.0
        %975 = vmatprep.subr.mxu0 0.0
        %976 = vmatpush2.msra.mxu0 0.0
        %977 = vmatprep.subr.mxu0 0.0
        %978 = vmatpush2.msra.mxu0 0.0
        %979 = vmatprep.subr.mxu0 0.0
        %980 = vmatpush2.msra.mxu0 0.0
        %981 = vmatprep.subr.mxu0 0.0
        %982 = vmatpush2.msra.mxu0 0.0
        %983 = vmatprep.subr.mxu0 0.0
        %984 = vmatpush2.msra.mxu0 0.0
        %985 = vmatprep.subr.mxu0 0.0
        %986 = vmatpush2.msra.mxu0 0.0
        %987 = vmatprep.mubr.f32.mxu0 0.0
        %988 = vmatmul.mubr.f32.gmra.mxu0 %v730
        %v989 = vpop.f32.mrf.mxu0
        %v990 = vadd.f32 0.0, %v989
        %v991 = vpop.f32.mrf.mxu0
        %992 = vmatprep.mubr.f32.mxu0 0.0
        %993 = vmatmul.mubr.f32.gmra.mxu0 %v731
        %v994 = vpop.f32.mrf.mxu0
        %v995 = vadd.f32 0.0, %v994
        %v996 = vpop.f32.mrf.mxu0
        %997 = vmatprep.mubr.f32.mxu0 0.0
        %998 = vmatmul.mubr.f32.gmra.mxu0 %v732
        %v999 = vpop.f32.mrf.mxu0
        %v1000 = vadd.f32 0.0, %v999
        %v1001 = vpop.f32.mrf.mxu0
        %1002 = vmatprep.mubr.f32.mxu0 0.0
        %1003 = vmatmul.mubr.f32.gmra.mxu0 %v733
        %v1004 = vpop.f32.mrf.mxu0
        %v1005 = vadd.f32 0.0, %v1004
        %v1006 = vpop.f32.mrf.mxu0
        %1007 = vmatprep.mubr.f32.mxu0 0.0
        %1008 = vmatmul.mubr.f32.gmra.mxu0 %v734
        %v1009 = vpop.f32.mrf.mxu0
        %v1010 = vadd.f32 0.0, %v1009
        %v1011 = vpop.f32.mrf.mxu0
        %1012 = vmatprep.mubr.f32.mxu0 0.0
        %1013 = vmatmul.mubr.f32.gmra.mxu0 %v735
        %v1014 = vpop.f32.mrf.mxu0
        %v1015 = vadd.f32 0.0, %v1014
        %v1016 = vpop.f32.mrf.mxu0
        %1017 = vmatprep.mubr.f32.mxu0 0.0
        %1018 = vmatmul.mubr.f32.gmra.mxu0 %v736
        %v1019 = vpop.f32.mrf.mxu0
        %v1020 = vadd.f32 0.0, %v1019
        %v1021 = vpop.f32.mrf.mxu0
        %1022 = vmatprep.mubr.f32.mxu0 0.0
        %1023 = vmatmul.mubr.f32.gmra.mxu0 %v737
        %v1024 = vpop.f32.mrf.mxu0
        %v1025 = vadd.f32 0.0, %v1024
        %v1026 = vpop.f32.mrf.mxu0
        %1027 = vmatprep.mubr.f32.mxu0 0.0
        %1028 = vmatmul.mubr.f32.gmra.mxu0 %v738
        %v1029 = vpop.f32.mrf.mxu0
        %v1030 = vadd.f32 0.0, %v1029
        %v1031 = vpop.f32.mrf.mxu0
        %1032 = vmatprep.mubr.f32.mxu0 0.0
        %1033 = vmatmul.mubr.f32.gmra.mxu0 %v739
        %v1034 = vpop.f32.mrf.mxu0
        %v1035 = vadd.f32 0.0, %v1034
        %v1036 = vpop.f32.mrf.mxu0
        %1037 = vmatprep.mubr.f32.mxu0 0.0
        %1038 = vmatmul.mubr.f32.gmra.mxu0 %v740
        %v1039 = vpop.f32.mrf.mxu0
        %v1040 = vadd.f32 0.0, %v1039
        %v1041 = vpop.f32.mrf.mxu0
        %1042 = vmatprep.mubr.f32.mxu0 0.0
        %1043 = vmatmul.mubr.f32.gmra.mxu0 %v741
        %v1044 = vpop.f32.mrf.mxu0
        %v1045 = vadd.f32 0.0, %v1044
        %v1046 = vpop.f32.mrf.mxu0
        %1047 = vmatprep.mubr.f32.mxu0 0.0
        %1048 = vmatmul.mubr.f32.gmra.mxu0 %v742
        %v1049 = vpop.f32.mrf.mxu0
        %v1050 = vadd.f32 0.0, %v1049
        %v1051 = vpop.f32.mrf.mxu0
        %1052 = vmatprep.mubr.f32.mxu0 0.0
        %1053 = vmatmul.mubr.f32.gmra.mxu0 %v743
        %v1054 = vpop.f32.mrf.mxu0
        %v1055 = vadd.f32 0.0, %v1054
        %v1056 = vpop.f32.mrf.mxu0
        %1057 = vmatprep.mubr.f32.mxu0 0.0
        %1058 = vmatmul.mubr.f32.gmra.mxu0 %v744
        %v1059 = vpop.f32.mrf.mxu0
        %v1060 = vadd.f32 0.0, %v1059
        %v1061 = vpop.f32.mrf.mxu0
        %1062 = vmatprep.mubr.f32.mxu0 0.0
        %1063 = vmatmul.mubr.f32.gmra.mxu0 %v745
        %v1064 = vpop.f32.mrf.mxu0
        %v1065 = vadd.f32 0.0, %v1064
        %v1066 = vpop.f32.mrf.mxu0
        %1067 = vdwg.mxu0
        %1068 = vmatprep.subr.mxu0 0.0
        %1069 = vmatpush1.msra.mxu0 %v761
        %1070 = vmatprep.subr.mxu0 0.0
        %1071 = vmatpush1.msra.mxu0 %v760
        %1072 = vmatprep.subr.mxu0 0.0
        %1073 = vmatpush1.msra.mxu0 %v759
        %1074 = vmatprep.subr.mxu0 0.0
        %1075 = vmatpush1.msra.mxu0 %v758
        %1076 = vmatprep.subr.mxu0 0.0
        %1077 = vmatpush1.msra.mxu0 %v757
        %1078 = vmatprep.subr.mxu0 0.0
        %1079 = vmatpush1.msra.mxu0 %v756
        %1080 = vmatprep.subr.mxu0 0.0
        %1081 = vmatpush1.msra.mxu0 %v755
        %1082 = vmatprep.subr.mxu0 0.0
        %1083 = vmatpush1.msra.mxu0 %v754
        %1084 = vmatprep.subr.mxu0 0.0
        %1085 = vmatpush1.msra.mxu0 %v753
        %1086 = vmatprep.subr.mxu0 0.0
        %1087 = vmatpush1.msra.mxu0 %v752
        %1088 = vmatprep.subr.mxu0 0.0
        %1089 = vmatpush1.msra.mxu0 %v751
        %1090 = vmatprep.subr.mxu0 0.0
        %1091 = vmatpush1.msra.mxu0 %v750
        %1092 = vmatprep.subr.mxu0 0.0
        %1093 = vmatpush1.msra.mxu0 %v749
        %1094 = vmatprep.subr.mxu0 0.0
        %1095 = vmatpush1.msra.mxu0 %v748
        %1096 = vmatprep.subr.mxu0 0.0
        %1097 = vmatpush1.msra.mxu0 %v747
        %1098 = vmatprep.subr.mxu0 0.0
        %1099 = vmatpush1.msra.mxu0 %v746
        %1100 = vmatprep.subr.mxu0 0.0
        %1101 = vmatpush2.msra.mxu0 0.0
        %1102 = vmatprep.subr.mxu0 0.0
        %1103 = vmatpush2.msra.mxu0 0.0
        %1104 = vmatprep.subr.mxu0 0.0
        %1105 = vmatpush2.msra.mxu0 0.0
        %1106 = vmatprep.subr.mxu0 0.0
        %1107 = vmatpush2.msra.mxu0 0.0
        %1108 = vmatprep.subr.mxu0 0.0
        %1109 = vmatpush2.msra.mxu0 0.0
        %1110 = vmatprep.subr.mxu0 0.0
        %1111 = vmatpush2.msra.mxu0 0.0
        %1112 = vmatprep.subr.mxu0 0.0
        %1113 = vmatpush2.msra.mxu0 0.0
        %1114 = vmatprep.subr.mxu0 0.0
        %1115 = vmatpush2.msra.mxu0 0.0
        %1116 = vmatprep.subr.mxu0 0.0
        %1117 = vmatpush2.msra.mxu0 0.0
        %1118 = vmatprep.subr.mxu0 0.0
        %1119 = vmatpush2.msra.mxu0 0.0
        %1120 = vmatprep.subr.mxu0 0.0
        %1121 = vmatpush2.msra.mxu0 0.0
        %1122 = vmatprep.subr.mxu0 0.0
        %1123 = vmatpush2.msra.mxu0 0.0
        %1124 = vmatprep.subr.mxu0 0.0
        %1125 = vmatpush2.msra.mxu0 0.0
        %1126 = vmatprep.subr.mxu0 0.0
        %1127 = vmatpush2.msra.mxu0 0.0
        %1128 = vmatprep.subr.mxu0 0.0
        %1129 = vmatpush2.msra.mxu0 0.0
        %1130 = vmatprep.subr.mxu0 0.0
        %1131 = vmatpush2.msra.mxu0 0.0
        %1132 = vmatprep.mubr.f32.mxu0 0.0
        %1133 = vmatmul.mubr.f32.gmra.mxu0 %v829
        %v1134 = vpop.f32.mrf.mxu0
        %v1135 = vadd.f32 0.0, %v1134
        %v1136 = vpop.f32.mrf.mxu0
        %1137 = vmatprep.mubr.f32.mxu0 0.0
        %1138 = vmatmul.mubr.f32.gmra.mxu0 %v835
        %v1139 = vpop.f32.mrf.mxu0
        %v1140 = vadd.f32 0.0, %v1139
        %v1141 = vpop.f32.mrf.mxu0
        %1142 = vmatprep.mubr.f32.mxu0 0.0
        %1143 = vmatmul.mubr.f32.gmra.mxu0 %v841
        %v1144 = vpop.f32.mrf.mxu0
        %v1145 = vadd.f32 0.0, %v1144
        %v1146 = vpop.f32.mrf.mxu0
        %1147 = vmatprep.mubr.f32.mxu0 0.0
        %1148 = vmatmul.mubr.f32.gmra.mxu0 %v847
        %v1149 = vpop.f32.mrf.mxu0
        %v1150 = vadd.f32 0.0, %v1149
        %v1151 = vpop.f32.mrf.mxu0
        %1152 = vmatprep.mubr.f32.mxu0 0.0
        %1153 = vmatmul.mubr.f32.gmra.mxu0 %v853
        %v1154 = vpop.f32.mrf.mxu0
        %v1155 = vadd.f32 0.0, %v1154
        %v1156 = vpop.f32.mrf.mxu0
        %1157 = vmatprep.mubr.f32.mxu0 0.0
        %1158 = vmatmul.mubr.f32.gmra.mxu0 %v859
        %v1159 = vpop.f32.mrf.mxu0
        %v1160 = vadd.f32 0.0, %v1159
        %v1161 = vpop.f32.mrf.mxu0
        %1162 = vmatprep.mubr.f32.mxu0 0.0
        %1163 = vmatmul.mubr.f32.gmra.mxu0 %v865
        %v1164 = vpop.f32.mrf.mxu0
        %v1165 = vadd.f32 0.0, %v1164
        %v1166 = vpop.f32.mrf.mxu0
        %1167 = vmatprep.mubr.f32.mxu0 0.0
        %1168 = vmatmul.mubr.f32.gmra.mxu0 %v871
        %v1169 = vpop.f32.mrf.mxu0
        %v1170 = vadd.f32 0.0, %v1169
        %v1171 = vpop.f32.mrf.mxu0
        %1172 = vmatprep.mubr.f32.mxu0 0.0
        %1173 = vmatmul.mubr.f32.gmra.mxu0 %v877
        %v1174 = vpop.f32.mrf.mxu0
        %v1175 = vadd.f32 0.0, %v1174
        %v1176 = vpop.f32.mrf.mxu0
        %1177 = vmatprep.mubr.f32.mxu0 0.0
        %1178 = vmatmul.mubr.f32.gmra.mxu0 %v883
        %v1179 = vpop.f32.mrf.mxu0
        %v1180 = vadd.f32 0.0, %v1179
        %v1181 = vpop.f32.mrf.mxu0
        %1182 = vmatprep.mubr.f32.mxu0 0.0
        %1183 = vmatmul.mubr.f32.gmra.mxu0 %v889
        %v1184 = vpop.f32.mrf.mxu0
        %v1185 = vadd.f32 0.0, %v1184
        %v1186 = vpop.f32.mrf.mxu0
        %1187 = vmatprep.mubr.f32.mxu0 0.0
        %1188 = vmatmul.mubr.f32.gmra.mxu0 %v895
        %v1189 = vpop.f32.mrf.mxu0
        %v1190 = vadd.f32 0.0, %v1189
        %v1191 = vpop.f32.mrf.mxu0
        %1192 = vmatprep.mubr.f32.mxu0 0.0
        %1193 = vmatmul.mubr.f32.gmra.mxu0 %v901
        %v1194 = vpop.f32.mrf.mxu0
        %v1195 = vadd.f32 0.0, %v1194
        %v1196 = vpop.f32.mrf.mxu0
        %1197 = vmatprep.mubr.f32.mxu0 0.0
        %1198 = vmatmul.mubr.f32.gmra.mxu0 %v907
        %v1199 = vpop.f32.mrf.mxu0
        %v1200 = vadd.f32 0.0, %v1199
        %v1201 = vpop.f32.mrf.mxu0
        %1202 = vmatprep.mubr.f32.mxu0 0.0
        %1203 = vmatmul.mubr.f32.gmra.mxu0 %v913
        %v1204 = vpop.f32.mrf.mxu0
        %v1205 = vadd.f32 0.0, %v1204
        %v1206 = vpop.f32.mrf.mxu0
        %1207 = vmatprep.mubr.f32.mxu0 0.0
        %1208 = vmatmul.mubr.f32.gmra.mxu0 %v919
        %v1209 = vpop.f32.mrf.mxu0
        %v1210 = vadd.f32 0.0, %v1209
        %v1211 = vpop.f32.mrf.mxu0
        %1212 = vdwg.mxu0
        %1213 = vmatprep.subr.mxu0 0.0
        %1214 = vmatpush1.msra.mxu0 %v761
        %1215 = vmatprep.subr.mxu0 0.0
        %1216 = vmatpush1.msra.mxu0 %v760
        %1217 = vmatprep.subr.mxu0 0.0
        %1218 = vmatpush1.msra.mxu0 %v759
        %1219 = vmatprep.subr.mxu0 0.0
        %1220 = vmatpush1.msra.mxu0 %v758
        %1221 = vmatprep.subr.mxu0 0.0
        %1222 = vmatpush1.msra.mxu0 %v757
        %1223 = vmatprep.subr.mxu0 0.0
        %1224 = vmatpush1.msra.mxu0 %v756
        %1225 = vmatprep.subr.mxu0 0.0
        %1226 = vmatpush1.msra.mxu0 %v755
        %1227 = vmatprep.subr.mxu0 0.0
        %1228 = vmatpush1.msra.mxu0 %v754
        %1229 = vmatprep.subr.mxu0 0.0
        %1230 = vmatpush1.msra.mxu0 %v753
        %1231 = vmatprep.subr.mxu0 0.0
        %1232 = vmatpush1.msra.mxu0 %v752
        %1233 = vmatprep.subr.mxu0 0.0
        %1234 = vmatpush1.msra.mxu0 %v751
        %1235 = vmatprep.subr.mxu0 0.0
        %1236 = vmatpush1.msra.mxu0 %v750
        %1237 = vmatprep.subr.mxu0 0.0
        %1238 = vmatpush1.msra.mxu0 %v749
        %1239 = vmatprep.subr.mxu0 0.0
        %1240 = vmatpush1.msra.mxu0 %v748
        %1241 = vmatprep.subr.mxu0 0.0
        %1242 = vmatpush1.msra.mxu0 %v747
        %1243 = vmatprep.subr.mxu0 0.0
        %1244 = vmatpush1.msra.mxu0 %v746
        %1245 = vmatprep.subr.mxu0 0.0
        %1246 = vmatpush2.msra.mxu0 0.0
        %1247 = vmatprep.subr.mxu0 0.0
        %1248 = vmatpush2.msra.mxu0 0.0
        %1249 = vmatprep.subr.mxu0 0.0
        %1250 = vmatpush2.msra.mxu0 0.0
        %1251 = vmatprep.subr.mxu0 0.0
        %1252 = vmatpush2.msra.mxu0 0.0
        %1253 = vmatprep.subr.mxu0 0.0
        %1254 = vmatpush2.msra.mxu0 0.0
        %1255 = vmatprep.subr.mxu0 0.0
        %1256 = vmatpush2.msra.mxu0 0.0
        %1257 = vmatprep.subr.mxu0 0.0
        %1258 = vmatpush2.msra.mxu0 0.0
        %1259 = vmatprep.subr.mxu0 0.0
        %1260 = vmatpush2.msra.mxu0 0.0
        %1261 = vmatprep.subr.mxu0 0.0
        %1262 = vmatpush2.msra.mxu0 0.0
        %1263 = vmatprep.subr.mxu0 0.0
        %1264 = vmatpush2.msra.mxu0 0.0
        %1265 = vmatprep.subr.mxu0 0.0
        %1266 = vmatpush2.msra.mxu0 0.0
        %1267 = vmatprep.subr.mxu0 0.0
        %1268 = vmatpush2.msra.mxu0 0.0
        %1269 = vmatprep.subr.mxu0 0.0
        %1270 = vmatpush2.msra.mxu0 0.0
        %1271 = vmatprep.subr.mxu0 0.0
        %1272 = vmatpush2.msra.mxu0 0.0
        %1273 = vmatprep.subr.mxu0 0.0
        %1274 = vmatpush2.msra.mxu0 0.0
        %1275 = vmatprep.subr.mxu0 0.0
        %1276 = vmatpush2.msra.mxu0 0.0
        %1277 = vmatprep.mubr.f32.mxu0 0.0
        %1278 = vmatmul.mubr.f32.gmra.mxu0 %v831
        %v1279 = vpop.f32.mrf.mxu0
        %v1280 = vadd.f32 0.0, %v1279
        %v1281 = vpop.f32.mrf.mxu0
        %1282 = vmatprep.mubr.f32.mxu0 0.0
        %1283 = vmatmul.mubr.f32.gmra.mxu0 %v837
        %v1284 = vpop.f32.mrf.mxu0
        %v1285 = vadd.f32 0.0, %v1284
        %v1286 = vpop.f32.mrf.mxu0
        %1287 = vmatprep.mubr.f32.mxu0 0.0
        %1288 = vmatmul.mubr.f32.gmra.mxu0 %v843
        %v1289 = vpop.f32.mrf.mxu0
        %v1290 = vadd.f32 0.0, %v1289
        %v1291 = vpop.f32.mrf.mxu0
        %1292 = vmatprep.mubr.f32.mxu0 0.0
        %1293 = vmatmul.mubr.f32.gmra.mxu0 %v849
        %v1294 = vpop.f32.mrf.mxu0
        %v1295 = vadd.f32 0.0, %v1294
        %v1296 = vpop.f32.mrf.mxu0
        %1297 = vmatprep.mubr.f32.mxu0 0.0
        %1298 = vmatmul.mubr.f32.gmra.mxu0 %v855
        %v1299 = vpop.f32.mrf.mxu0
        %v1300 = vadd.f32 0.0, %v1299
        %v1301 = vpop.f32.mrf.mxu0
        %1302 = vmatprep.mubr.f32.mxu0 0.0
        %1303 = vmatmul.mubr.f32.gmra.mxu0 %v861
        %v1304 = vpop.f32.mrf.mxu0
        %v1305 = vadd.f32 0.0, %v1304
        %v1306 = vpop.f32.mrf.mxu0
        %1307 = vmatprep.mubr.f32.mxu0 0.0
        %1308 = vmatmul.mubr.f32.gmra.mxu0 %v867
        %v1309 = vpop.f32.mrf.mxu0
        %v1310 = vadd.f32 0.0, %v1309
        %v1311 = vpop.f32.mrf.mxu0
        %1312 = vmatprep.mubr.f32.mxu0 0.0
        %1313 = vmatmul.mubr.f32.gmra.mxu0 %v873
        %v1314 = vpop.f32.mrf.mxu0
        %v1315 = vadd.f32 0.0, %v1314
        %v1316 = vpop.f32.mrf.mxu0
        %1317 = vmatprep.mubr.f32.mxu0 0.0
        %1318 = vmatmul.mubr.f32.gmra.mxu0 %v879
        %v1319 = vpop.f32.mrf.mxu0
        %v1320 = vadd.f32 0.0, %v1319
        %v1321 = vpop.f32.mrf.mxu0
        %1322 = vmatprep.mubr.f32.mxu0 0.0
        %1323 = vmatmul.mubr.f32.gmra.mxu0 %v885
        %v1324 = vpop.f32.mrf.mxu0
        %v1325 = vadd.f32 0.0, %v1324
        %v1326 = vpop.f32.mrf.mxu0
        %1327 = vmatprep.mubr.f32.mxu0 0.0
        %1328 = vmatmul.mubr.f32.gmra.mxu0 %v891
        %v1329 = vpop.f32.mrf.mxu0
        %v1330 = vadd.f32 0.0, %v1329
        %v1331 = vpop.f32.mrf.mxu0
        %1332 = vmatprep.mubr.f32.mxu0 0.0
        %1333 = vmatmul.mubr.f32.gmra.mxu0 %v897
        %v1334 = vpop.f32.mrf.mxu0
        %v1335 = vadd.f32 0.0, %v1334
        %v1336 = vpop.f32.mrf.mxu0
        %1337 = vmatprep.mubr.f32.mxu0 0.0
        %1338 = vmatmul.mubr.f32.gmra.mxu0 %v903
        %v1339 = vpop.f32.mrf.mxu0
        %v1340 = vadd.f32 0.0, %v1339
        %v1341 = vpop.f32.mrf.mxu0
        %1342 = vmatprep.mubr.f32.mxu0 0.0
        %1343 = vmatmul.mubr.f32.gmra.mxu0 %v909
        %v1344 = vpop.f32.mrf.mxu0
        %v1345 = vadd.f32 0.0, %v1344
        %v1346 = vpop.f32.mrf.mxu0
        %1347 = vmatprep.mubr.f32.mxu0 0.0
        %1348 = vmatmul.mubr.f32.gmra.mxu0 %v915
        %v1349 = vpop.f32.mrf.mxu0
        %v1350 = vadd.f32 0.0, %v1349
        %v1351 = vpop.f32.mrf.mxu0
        %1352 = vmatprep.mubr.f32.mxu0 0.0
        %1353 = vmatmul.mubr.f32.gmra.mxu0 %v921
        %v1354 = vpop.f32.mrf.mxu0
        %v1355 = vadd.f32 0.0, %v1354
        %v1356 = vpop.f32.mrf.mxu0
        %1357 = vdwg.mxu0
        %1358 = vmatprep.subr.mxu0 0.0
        %1359 = vmatpush1.msra.mxu0 %v761
        %1360 = vmatprep.subr.mxu0 0.0
        %1361 = vmatpush1.msra.mxu0 %v760
        %1362 = vmatprep.subr.mxu0 0.0
        %1363 = vmatpush1.msra.mxu0 %v759
        %1364 = vmatprep.subr.mxu0 0.0
        %1365 = vmatpush1.msra.mxu0 %v758
        %1366 = vmatprep.subr.mxu0 0.0
        %1367 = vmatpush1.msra.mxu0 %v757
        %1368 = vmatprep.subr.mxu0 0.0
        %1369 = vmatpush1.msra.mxu0 %v756
        %1370 = vmatprep.subr.mxu0 0.0
        %1371 = vmatpush1.msra.mxu0 %v755
        %1372 = vmatprep.subr.mxu0 0.0
        %1373 = vmatpush1.msra.mxu0 %v754
        %1374 = vmatprep.subr.mxu0 0.0
        %1375 = vmatpush1.msra.mxu0 %v753
        %1376 = vmatprep.subr.mxu0 0.0
        %1377 = vmatpush1.msra.mxu0 %v752
        %1378 = vmatprep.subr.mxu0 0.0
        %1379 = vmatpush1.msra.mxu0 %v751
        %1380 = vmatprep.subr.mxu0 0.0
        %1381 = vmatpush1.msra.mxu0 %v750
        %1382 = vmatprep.subr.mxu0 0.0
        %1383 = vmatpush1.msra.mxu0 %v749
        %1384 = vmatprep.subr.mxu0 0.0
        %1385 = vmatpush1.msra.mxu0 %v748
        %1386 = vmatprep.subr.mxu0 0.0
        %1387 = vmatpush1.msra.mxu0 %v747
        %1388 = vmatprep.subr.mxu0 0.0
        %1389 = vmatpush1.msra.mxu0 %v746
        %1390 = vmatprep.subr.mxu0 0.0
        %1391 = vmatpush2.msra.mxu0 0.0
        %1392 = vmatprep.subr.mxu0 0.0
        %1393 = vmatpush2.msra.mxu0 0.0
        %1394 = vmatprep.subr.mxu0 0.0
        %1395 = vmatpush2.msra.mxu0 0.0
        %1396 = vmatprep.subr.mxu0 0.0
        %1397 = vmatpush2.msra.mxu0 0.0
        %1398 = vmatprep.subr.mxu0 0.0
        %1399 = vmatpush2.msra.mxu0 0.0
        %1400 = vmatprep.subr.mxu0 0.0
        %1401 = vmatpush2.msra.mxu0 0.0
        %1402 = vmatprep.subr.mxu0 0.0
        %1403 = vmatpush2.msra.mxu0 0.0
        %1404 = vmatprep.subr.mxu0 0.0
        %1405 = vmatpush2.msra.mxu0 0.0
        %1406 = vmatprep.subr.mxu0 0.0
        %1407 = vmatpush2.msra.mxu0 0.0
        %1408 = vmatprep.subr.mxu0 0.0
        %1409 = vmatpush2.msra.mxu0 0.0
        %1410 = vmatprep.subr.mxu0 0.0
        %1411 = vmatpush2.msra.mxu0 0.0
        %1412 = vmatprep.subr.mxu0 0.0
        %1413 = vmatpush2.msra.mxu0 0.0
        %1414 = vmatprep.subr.mxu0 0.0
        %1415 = vmatpush2.msra.mxu0 0.0
        %1416 = vmatprep.subr.mxu0 0.0
        %1417 = vmatpush2.msra.mxu0 0.0
        %1418 = vmatprep.subr.mxu0 0.0
        %1419 = vmatpush2.msra.mxu0 0.0
        %1420 = vmatprep.subr.mxu0 0.0
        %1421 = vmatpush2.msra.mxu0 0.0
        %1422 = vmatprep.mubr.f32.mxu0 0.0
        %1423 = vmatmul.mubr.f32.gmra.mxu0 %v990
        %v1424 = vpop.f32.mrf.mxu0
        %v1425 = vadd.f32 0.0, %v1424
        %v1426 = vpop.f32.mrf.mxu0
        %1427 = vmatprep.mubr.f32.mxu0 0.0
        %1428 = vmatmul.mubr.f32.gmra.mxu0 %v995
        %v1429 = vpop.f32.mrf.mxu0
        %v1430 = vadd.f32 0.0, %v1429
        %v1431 = vpop.f32.mrf.mxu0
        %1432 = vmatprep.mubr.f32.mxu0 0.0
        %1433 = vmatmul.mubr.f32.gmra.mxu0 %v1000
        %v1434 = vpop.f32.mrf.mxu0
        %v1435 = vadd.f32 0.0, %v1434
        %v1436 = vpop.f32.mrf.mxu0
        %1437 = vmatprep.mubr.f32.mxu0 0.0
        %1438 = vmatmul.mubr.f32.gmra.mxu0 %v1005
        %v1439 = vpop.f32.mrf.mxu0
        %v1440 = vadd.f32 0.0, %v1439
        %v1441 = vpop.f32.mrf.mxu0
        %1442 = vmatprep.mubr.f32.mxu0 0.0
        %1443 = vmatmul.mubr.f32.gmra.mxu0 %v1010
        %v1444 = vpop.f32.mrf.mxu0
        %v1445 = vadd.f32 0.0, %v1444
        %v1446 = vpop.f32.mrf.mxu0
        %1447 = vmatprep.mubr.f32.mxu0 0.0
        %1448 = vmatmul.mubr.f32.gmra.mxu0 %v1015
        %v1449 = vpop.f32.mrf.mxu0
        %v1450 = vadd.f32 0.0, %v1449
        %v1451 = vpop.f32.mrf.mxu0
        %1452 = vmatprep.mubr.f32.mxu0 0.0
        %1453 = vmatmul.mubr.f32.gmra.mxu0 %v1020
        %v1454 = vpop.f32.mrf.mxu0
        %v1455 = vadd.f32 0.0, %v1454
        %v1456 = vpop.f32.mrf.mxu0
        %1457 = vmatprep.mubr.f32.mxu0 0.0
        %1458 = vmatmul.mubr.f32.gmra.mxu0 %v1025
        %v1459 = vpop.f32.mrf.mxu0
        %v1460 = vadd.f32 0.0, %v1459
        %v1461 = vpop.f32.mrf.mxu0
        %1462 = vmatprep.mubr.f32.mxu0 0.0
        %1463 = vmatmul.mubr.f32.gmra.mxu0 %v1030
        %v1464 = vpop.f32.mrf.mxu0
        %v1465 = vadd.f32 0.0, %v1464
        %v1466 = vpop.f32.mrf.mxu0
        %1467 = vmatprep.mubr.f32.mxu0 0.0
        %1468 = vmatmul.mubr.f32.gmra.mxu0 %v1035
        %v1469 = vpop.f32.mrf.mxu0
        %v1470 = vadd.f32 0.0, %v1469
        %v1471 = vpop.f32.mrf.mxu0
        %1472 = vmatprep.mubr.f32.mxu0 0.0
        %1473 = vmatmul.mubr.f32.gmra.mxu0 %v1040
        %v1474 = vpop.f32.mrf.mxu0
        %v1475 = vadd.f32 0.0, %v1474
        %v1476 = vpop.f32.mrf.mxu0
        %1477 = vmatprep.mubr.f32.mxu0 0.0
        %1478 = vmatmul.mubr.f32.gmra.mxu0 %v1045
        %v1479 = vpop.f32.mrf.mxu0
        %v1480 = vadd.f32 0.0, %v1479
        %v1481 = vpop.f32.mrf.mxu0
        %1482 = vmatprep.mubr.f32.mxu0 0.0
        %1483 = vmatmul.mubr.f32.gmra.mxu0 %v1050
        %v1484 = vpop.f32.mrf.mxu0
        %v1485 = vadd.f32 0.0, %v1484
        %v1486 = vpop.f32.mrf.mxu0
        %1487 = vmatprep.mubr.f32.mxu0 0.0
        %1488 = vmatmul.mubr.f32.gmra.mxu0 %v1055
        %v1489 = vpop.f32.mrf.mxu0
        %v1490 = vadd.f32 0.0, %v1489
        %v1491 = vpop.f32.mrf.mxu0
        %1492 = vmatprep.mubr.f32.mxu0 0.0
        %1493 = vmatmul.mubr.f32.gmra.mxu0 %v1060
        %v1494 = vpop.f32.mrf.mxu0
        %v1495 = vadd.f32 0.0, %v1494
        %v1496 = vpop.f32.mrf.mxu0
        %1497 = vmatprep.mubr.f32.mxu0 0.0
        %1498 = vmatmul.mubr.f32.gmra.mxu0 %v1065
        %v1499 = vpop.f32.mrf.mxu0
        %v1500 = vadd.f32 0.0, %v1499
        %v1501 = vpop.f32.mrf.mxu0
        %1502 = vdwg.mxu0
        %v1503 = vmul.f32 %v1135, %v1135
        %v1504 = vmul.f32 %v1140, %v1140
        %v1505 = vmul.f32 %v1145, %v1145
        %v1506 = vmul.f32 %v1150, %v1150
        %v1507 = vmul.f32 %v1155, %v1155
        %v1508 = vmul.f32 %v1160, %v1160
        %v1509 = vmul.f32 %v1165, %v1165
        %v1510 = vmul.f32 %v1170, %v1170
        %v1511 = vmul.f32 %v1175, %v1175
        %v1512 = vmul.f32 %v1180, %v1180
        %v1513 = vmul.f32 %v1185, %v1185
        %v1514 = vmul.f32 %v1190, %v1190
        %v1515 = vmul.f32 %v1195, %v1195
        %v1516 = vmul.f32 %v1200, %v1200
        %v1517 = vmul.f32 %v1205, %v1205
        %v1518 = vmul.f32 %v1210, %v1210
        %v1519 = vmul.f32 %v1280, %v1280
        %v1520 = vmul.f32 %v1285, %v1285
        %v1521 = vmul.f32 %v1290, %v1290
        %v1522 = vmul.f32 %v1295, %v1295
        %v1523 = vmul.f32 %v1300, %v1300
        %v1524 = vmul.f32 %v1305, %v1305
        %v1525 = vmul.f32 %v1310, %v1310
        %v1526 = vmul.f32 %v1315, %v1315
        %v1527 = vmul.f32 %v1320, %v1320
        %v1528 = vmul.f32 %v1325, %v1325
        %v1529 = vmul.f32 %v1330, %v1330
        %v1530 = vmul.f32 %v1335, %v1335
        %v1531 = vmul.f32 %v1340, %v1340
        %v1532 = vmul.f32 %v1345, %v1345
        %v1533 = vmul.f32 %v1350, %v1350
        %v1534 = vmul.f32 %v1355, %v1355
        %v1535 = vadd.f32 %v1503, %v1519
        %v1536 = vadd.f32 %v1504, %v1520
        %v1537 = vadd.f32 %v1505, %v1521
        %v1538 = vadd.f32 %v1506, %v1522
        %v1539 = vadd.f32 %v1507, %v1523
        %v1540 = vadd.f32 %v1508, %v1524
        %v1541 = vadd.f32 %v1509, %v1525
        %v1542 = vadd.f32 %v1510, %v1526
        %v1543 = vadd.f32 %v1511, %v1527
        %v1544 = vadd.f32 %v1512, %v1528
        %v1545 = vadd.f32 %v1513, %v1529
        %v1546 = vadd.f32 %v1514, %v1530
        %v1547 = vadd.f32 %v1515, %v1531
        %v1548 = vadd.f32 %v1516, %v1532
        %v1549 = vadd.f32 %v1517, %v1533
        %v1550 = vadd.f32 %v1518, %v1534
        %v1551 = vmul.f32 %v1425, %v1425
        %v1552 = vmul.f32 %v1430, %v1430
        %v1553 = vmul.f32 %v1435, %v1435
        %v1554 = vmul.f32 %v1440, %v1440
        %v1555 = vmul.f32 %v1445, %v1445
        %v1556 = vmul.f32 %v1450, %v1450
        %v1557 = vmul.f32 %v1455, %v1455
        %v1558 = vmul.f32 %v1460, %v1460
        %v1559 = vmul.f32 %v1465, %v1465
        %v1560 = vmul.f32 %v1470, %v1470
        %v1561 = vmul.f32 %v1475, %v1475
        %v1562 = vmul.f32 %v1480, %v1480
        %v1563 = vmul.f32 %v1485, %v1485
        %v1564 = vmul.f32 %v1490, %v1490
        %v1565 = vmul.f32 %v1495, %v1495
        %v1566 = vmul.f32 %v1500, %v1500
        %v1567 = vadd.f32 %v1535, %v1551
        %v1568 = vadd.f32 %v1536, %v1552
        %v1569 = vadd.f32 %v1537, %v1553
        %v1570 = vadd.f32 %v1538, %v1554
        %v1571 = vadd.f32 %v1539, %v1555
        %v1572 = vadd.f32 %v1540, %v1556
        %v1573 = vadd.f32 %v1541, %v1557
        %v1574 = vadd.f32 %v1542, %v1558
        %v1575 = vadd.f32 %v1543, %v1559
        %v1576 = vadd.f32 %v1544, %v1560
        %v1577 = vadd.f32 %v1545, %v1561
        %v1578 = vadd.f32 %v1546, %v1562
        %v1579 = vadd.f32 %v1547, %v1563
        %v1580 = vadd.f32 %v1548, %v1564
        %v1581 = vadd.f32 %v1549, %v1565
        %v1582 = vadd.f32 %v1550, %v1566
        %v1583 = vmax.f32 %v1567, 1e-24
        %v1584 = vmax.f32 %v1568, 1e-24
        %v1585 = vmax.f32 %v1569, 1e-24
        %v1586 = vmax.f32 %v1570, 1e-24
        %v1587 = vmax.f32 %v1571, 1e-24
        %v1588 = vmax.f32 %v1572, 1e-24
        %v1589 = vmax.f32 %v1573, 1e-24
        %v1590 = vmax.f32 %v1574, 1e-24
        %v1591 = vmax.f32 %v1575, 1e-24
        %v1592 = vmax.f32 %v1576, 1e-24
        %v1593 = vmax.f32 %v1577, 1e-24
        %v1594 = vmax.f32 %v1578, 1e-24
        %v1595 = vmax.f32 %v1579, 1e-24
        %v1596 = vmax.f32 %v1580, 1e-24
        %v1597 = vmax.f32 %v1581, 1e-24
        %v1598 = vmax.f32 %v1582, 1e-24
        %v1599 = vrsqrt.pop %v1583
        %v1600 = vrsqrt.pop %v1584
        %v1601 = vrsqrt.pop %v1585
        %v1602 = vrsqrt.pop %v1586
        %v1603 = vrsqrt.pop %v1587
        %v1604 = vrsqrt.pop %v1588
        %v1605 = vrsqrt.pop %v1589
        %v1606 = vrsqrt.pop %v1590
        %v1607 = vrsqrt.pop %v1591
        %v1608 = vrsqrt.pop %v1592
        %v1609 = vrsqrt.pop %v1593
        %v1610 = vrsqrt.pop %v1594
        %v1611 = vrsqrt.pop %v1595
        %v1612 = vrsqrt.pop %v1596
        %v1613 = vrsqrt.pop %v1597
        %v1614 = vrsqrt.pop %v1598
        %v1615 = vmul.f32 %v1135, %v1599
        %v1616 = vmul.f32 %v1140, %v1600
        %v1617 = vmul.f32 %v1145, %v1601
        %v1618 = vmul.f32 %v1150, %v1602
        %v1619 = vmul.f32 %v1155, %v1603
        %v1620 = vmul.f32 %v1160, %v1604
        %v1621 = vmul.f32 %v1165, %v1605
        %v1622 = vmul.f32 %v1170, %v1606
        %v1623 = vmul.f32 %v1175, %v1607
        %v1624 = vmul.f32 %v1180, %v1608
        %v1625 = vmul.f32 %v1185, %v1609
        %v1626 = vmul.f32 %v1190, %v1610
        %v1627 = vmul.f32 %v1195, %v1611
        %v1628 = vmul.f32 %v1200, %v1612
        %v1629 = vmul.f32 %v1205, %v1613
        %v1630 = vmul.f32 %v1210, %v1614
        %v1631 = vmax.f32 %v1615, -1.0
        %v1632 = vmax.f32 %v1616, -1.0
        %v1633 = vmax.f32 %v1617, -1.0
        %v1634 = vmax.f32 %v1618, -1.0
        %v1635 = vmax.f32 %v1619, -1.0
        %v1636 = vmax.f32 %v1620, -1.0
        %v1637 = vmax.f32 %v1621, -1.0
        %v1638 = vmax.f32 %v1622, -1.0
        %v1639 = vmax.f32 %v1623, -1.0
        %v1640 = vmax.f32 %v1624, -1.0
        %v1641 = vmax.f32 %v1625, -1.0
        %v1642 = vmax.f32 %v1626, -1.0
        %v1643 = vmax.f32 %v1627, -1.0
        %v1644 = vmax.f32 %v1628, -1.0
        %v1645 = vmax.f32 %v1629, -1.0
        %v1646 = vmax.f32 %v1630, -1.0
        %v1647 = vmin.f32 %v1631, 1.0
        %v1648 = vmin.f32 %v1632, 1.0
        %v1649 = vmin.f32 %v1633, 1.0
        %v1650 = vmin.f32 %v1634, 1.0
        %v1651 = vmin.f32 %v1635, 1.0
        %v1652 = vmin.f32 %v1636, 1.0
        %v1653 = vmin.f32 %v1637, 1.0
        %v1654 = vmin.f32 %v1638, 1.0
        %v1655 = vmin.f32 %v1639, 1.0
        %v1656 = vmin.f32 %v1640, 1.0
        %v1657 = vmin.f32 %v1641, 1.0
        %v1658 = vmin.f32 %v1642, 1.0
        %v1659 = vmin.f32 %v1643, 1.0
        %v1660 = vmin.f32 %v1644, 1.0
        %v1661 = vmin.f32 %v1645, 1.0
        %v1662 = vmin.f32 %v1646, 1.0
        %1663 = vst [vmem:[%s247] sm:$0xff] %v1647
        %1664 = vst [vmem:[%s247 + $0x8] sm:$0xff] %v1648
        %1665 = vst [vmem:[%s247 + $0x10] sm:$0xff] %v1649
        %1666 = vst [vmem:[%s247 + $0x18] sm:$0xff] %v1650
        %1667 = vst [vmem:[%s247 + $0x20] sm:$0xff] %v1651
        %1668 = vst [vmem:[%s247 + $0x28] sm:$0xff] %v1652
        %1669 = vst [vmem:[%s247 + $0x30] sm:$0xff] %v1653
        %1670 = vst [vmem:[%s247 + $0x38] sm:$0xff] %v1654
        %1671 = vst [vmem:[%s247 + $0x40] sm:$0xff] %v1655
        %1672 = vst [vmem:[%s247 + $0x48] sm:$0xff] %v1656
        %1673 = vst [vmem:[%s247 + $0x50] sm:$0xff] %v1657
        %1674 = vst [vmem:[%s247 + $0x58] sm:$0xff] %v1658
        %1675 = vst [vmem:[%s247 + $0x60] sm:$0xff] %v1659
        %1676 = vst [vmem:[%s247 + $0x68] sm:$0xff] %v1660
        %1677 = vst [vmem:[%s247 + $0x70] sm:$0xff] %v1661
        %1678 = vst [vmem:[%s247 + $0x78] sm:$0xff] %v1662
        %v1679 = vmul.f32 %v1280, %v1599
        %v1680 = vmul.f32 %v1285, %v1600
        %v1681 = vmul.f32 %v1290, %v1601
        %v1682 = vmul.f32 %v1295, %v1602
        %v1683 = vmul.f32 %v1300, %v1603
        %v1684 = vmul.f32 %v1305, %v1604
        %v1685 = vmul.f32 %v1310, %v1605
        %v1686 = vmul.f32 %v1315, %v1606
        %v1687 = vmul.f32 %v1320, %v1607
        %v1688 = vmul.f32 %v1325, %v1608
        %v1689 = vmul.f32 %v1330, %v1609
        %v1690 = vmul.f32 %v1335, %v1610
        %v1691 = vmul.f32 %v1340, %v1611
        %v1692 = vmul.f32 %v1345, %v1612
        %v1693 = vmul.f32 %v1350, %v1613
        %v1694 = vmul.f32 %v1355, %v1614
        %v1695 = vmax.f32 %v1679, -1.0
        %v1696 = vmax.f32 %v1680, -1.0
        %v1697 = vmax.f32 %v1681, -1.0
        %v1698 = vmax.f32 %v1682, -1.0
        %v1699 = vmax.f32 %v1683, -1.0
        %v1700 = vmax.f32 %v1684, -1.0
        %v1701 = vmax.f32 %v1685, -1.0
        %v1702 = vmax.f32 %v1686, -1.0
        %v1703 = vmax.f32 %v1687, -1.0
        %v1704 = vmax.f32 %v1688, -1.0
        %v1705 = vmax.f32 %v1689, -1.0
        %v1706 = vmax.f32 %v1690, -1.0
        %v1707 = vmax.f32 %v1691, -1.0
        %v1708 = vmax.f32 %v1692, -1.0
        %v1709 = vmax.f32 %v1693, -1.0
        %v1710 = vmax.f32 %v1694, -1.0
        %v1711 = vmin.f32 %v1695, 1.0
        %v1712 = vmin.f32 %v1696, 1.0
        %v1713 = vmin.f32 %v1697, 1.0
        %v1714 = vmin.f32 %v1698, 1.0
        %v1715 = vmin.f32 %v1699, 1.0
        %v1716 = vmin.f32 %v1700, 1.0
        %v1717 = vmin.f32 %v1701, 1.0
        %v1718 = vmin.f32 %v1702, 1.0
        %v1719 = vmin.f32 %v1703, 1.0
        %v1720 = vmin.f32 %v1704, 1.0
        %v1721 = vmin.f32 %v1705, 1.0
        %v1722 = vmin.f32 %v1706, 1.0
        %v1723 = vmin.f32 %v1707, 1.0
        %v1724 = vmin.f32 %v1708, 1.0
        %v1725 = vmin.f32 %v1709, 1.0
        %v1726 = vmin.f32 %v1710, 1.0
        %s1727 = scalar_lea.vmem %s247, 128 [#allocation8]
        %1728 = vst [vmem:[%s1727] sm:$0xff] %v1711
        %1729 = vst [vmem:[%s1727 + $0x8] sm:$0xff] %v1712
        %1730 = vst [vmem:[%s1727 + $0x10] sm:$0xff] %v1713
        %1731 = vst [vmem:[%s1727 + $0x18] sm:$0xff] %v1714
        %1732 = vst [vmem:[%s1727 + $0x20] sm:$0xff] %v1715
        %1733 = vst [vmem:[%s1727 + $0x28] sm:$0xff] %v1716
        %1734 = vst [vmem:[%s1727 + $0x30] sm:$0xff] %v1717
        %1735 = vst [vmem:[%s1727 + $0x38] sm:$0xff] %v1718
        %1736 = vst [vmem:[%s1727 + $0x40] sm:$0xff] %v1719
        %1737 = vst [vmem:[%s1727 + $0x48] sm:$0xff] %v1720
        %1738 = vst [vmem:[%s1727 + $0x50] sm:$0xff] %v1721
        %1739 = vst [vmem:[%s1727 + $0x58] sm:$0xff] %v1722
        %1740 = vst [vmem:[%s1727 + $0x60] sm:$0xff] %v1723
        %1741 = vst [vmem:[%s1727 + $0x68] sm:$0xff] %v1724
        %1742 = vst [vmem:[%s1727 + $0x70] sm:$0xff] %v1725
        %1743 = vst [vmem:[%s1727 + $0x78] sm:$0xff] %v1726
        %v1744 = vmul.f32 %v1425, %v1599
        %v1745 = vmul.f32 %v1430, %v1600
        %v1746 = vmul.f32 %v1435, %v1601
        %v1747 = vmul.f32 %v1440, %v1602
        %v1748 = vmul.f32 %v1445, %v1603
        %v1749 = vmul.f32 %v1450, %v1604
        %v1750 = vmul.f32 %v1455, %v1605
        %v1751 = vmul.f32 %v1460, %v1606
        %v1752 = vmul.f32 %v1465, %v1607
        %v1753 = vmul.f32 %v1470, %v1608
        %v1754 = vmul.f32 %v1475, %v1609
        %v1755 = vmul.f32 %v1480, %v1610
        %v1756 = vmul.f32 %v1485, %v1611
        %v1757 = vmul.f32 %v1490, %v1612
        %v1758 = vmul.f32 %v1495, %v1613
        %v1759 = vmul.f32 %v1500, %v1614
        %v1760 = vmax.f32 %v1744, -1.0
        %v1761 = vmax.f32 %v1745, -1.0
        %v1762 = vmax.f32 %v1746, -1.0
        %v1763 = vmax.f32 %v1747, -1.0
        %v1764 = vmax.f32 %v1748, -1.0
        %v1765 = vmax.f32 %v1749, -1.0
        %v1766 = vmax.f32 %v1750, -1.0
        %v1767 = vmax.f32 %v1751, -1.0
        %v1768 = vmax.f32 %v1752, -1.0
        %v1769 = vmax.f32 %v1753, -1.0
        %v1770 = vmax.f32 %v1754, -1.0
        %v1771 = vmax.f32 %v1755, -1.0
        %v1772 = vmax.f32 %v1756, -1.0
        %v1773 = vmax.f32 %v1757, -1.0
        %v1774 = vmax.f32 %v1758, -1.0
        %v1775 = vmax.f32 %v1759, -1.0
        %v1776 = vmin.f32 %v1760, 1.0
        %v1777 = vmin.f32 %v1761, 1.0
        %v1778 = vmin.f32 %v1762, 1.0
        %v1779 = vmin.f32 %v1763, 1.0
        %v1780 = vmin.f32 %v1764, 1.0
        %v1781 = vmin.f32 %v1765, 1.0
        %v1782 = vmin.f32 %v1766, 1.0
        %v1783 = vmin.f32 %v1767, 1.0
        %v1784 = vmin.f32 %v1768, 1.0
        %v1785 = vmin.f32 %v1769, 1.0
        %v1786 = vmin.f32 %v1770, 1.0
        %v1787 = vmin.f32 %v1771, 1.0
        %v1788 = vmin.f32 %v1772, 1.0
        %v1789 = vmin.f32 %v1773, 1.0
        %v1790 = vmin.f32 %v1774, 1.0
        %v1791 = vmin.f32 %v1775, 1.0
        %s1792 = scalar_lea.vmem %s247, 256 [#allocation8]
        %1793 = vst [vmem:[%s1792] sm:$0xff] %v1776
        %1794 = vst [vmem:[%s1792 + $0x8] sm:$0xff] %v1777
        %1795 = vst [vmem:[%s1792 + $0x10] sm:$0xff] %v1778
        %1796 = vst [vmem:[%s1792 + $0x18] sm:$0xff] %v1779
        %1797 = vst [vmem:[%s1792 + $0x20] sm:$0xff] %v1780
        %1798 = vst [vmem:[%s1792 + $0x28] sm:$0xff] %v1781
        %1799 = vst [vmem:[%s1792 + $0x30] sm:$0xff] %v1782
        %1800 = vst [vmem:[%s1792 + $0x38] sm:$0xff] %v1783
        %1801 = vst [vmem:[%s1792 + $0x40] sm:$0xff] %v1784
        %1802 = vst [vmem:[%s1792 + $0x48] sm:$0xff] %v1785
        %1803 = vst [vmem:[%s1792 + $0x50] sm:$0xff] %v1786
        %1804 = vst [vmem:[%s1792 + $0x58] sm:$0xff] %v1787
        %1805 = vst [vmem:[%s1792 + $0x60] sm:$0xff] %v1788
        %1806 = vst [vmem:[%s1792 + $0x68] sm:$0xff] %v1789
        %1807 = vst [vmem:[%s1792 + $0x70] sm:$0xff] %v1790
        %1808 = vst [vmem:[%s1792 + $0x78] sm:$0xff] %v1791
        %s1809 = sand.u32 %s124, 1
        %s1810 = scalar_lea.sflag [#allocation4], %s1809
        %s1811 = sand.u32 %s124, 1
        %s1812 = smul.addr %s1811, 384
        %s1813 = scalar_lea.vmem [#allocation8], %s1812
        // Predicated region
        $region45: #{tpu_custom_call.1} parent=31 // pred_check
          %p1814 = pneg %p134
        $region46: #{tpu_custom_call.1} parent=31 // pred_check_branch
          %1816 = sbr.rel (%p1814) target = $region48
        $region47: #{tpu_custom_call.1} parent=31 // pred_region
          %s1817 = smul.u32 16, %s27
          %s1819 = ssub.s32 6144, 6144
          %1820 = vsyncadd %s1810, %s1819
          %s1821 = sadd.s32 %s28, %s1817
          %s1822 = smul.addr %s26, 48
          %s1823 = sadd.s32 %s1821, %s1822
          %s1824 = smul.addr %s1823, 128
          %s1825 = scalar_lea.hbm %s3, %s1824
          %s1826 = sshll.u32 %s1813, 4
          %s1827 = int_to_ptr.vmem [resolvable:$true] %s1826
          %1832 = dma.vmem_to_hbm [thread:$0]  %s1827, 6144, %s1825, %s1810, 128, 128, 8
        $region48: #{tpu_custom_call.1} parent=31 // pred_fallthru
          _
      $region32: #{tpu_custom_call.1} parent=5 // pred_fallthru
        _
      %p1833 = scmp.le.s32.totalorder 2, %s16
      // Predicated region
      $region49: #{tpu_custom_call.1} parent=5 // pred_check
        %p1834 = pneg %p1833
      $region50: #{tpu_custom_call.1} parent=5 // pred_check_branch
        %1836 = sbr.rel (%p1834) target = $region52
      $region51: #{tpu_custom_call.1} parent=5 // pred_region
        %s1837 = ssub.s32 %s16, 2
        // Predicated region
        $region53: #{tpu_custom_call.1} parent=51 // pred_check
          %p1838 = pneg %p140
        $region54: #{tpu_custom_call.1} parent=51 // pred_check_branch
          %1840 = sbr.rel (%p1838) target = $region56
        $region55: #{tpu_custom_call.1} parent=51 // pred_region
          %s1841 = sand.u32 %s125, 1
          %s1842 = scalar_lea.sflag [#allocation4], %s1841
          %s1843 = sand.u32 %s125, 1
          %s1844 = smul.addr %s1843, 384
          %s1845 = scalar_lea.vmem [#allocation8], %s1844
          %1846 = dma.done %s1842, 6144
        $region56: #{tpu_custom_call.1} parent=51 // pred_fallthru
          _
      $region52: #{tpu_custom_call.1} parent=5 // pred_fallthru
        _
    $region6: #{tpu_custom_call.1} parent=1 // loop_footer
      %s20 = sadd.s32 1, %s16
    $region7: #{tpu_custom_call.1} parent=1 // loop_footer_branch
      %15 = sbr.rel target = $region3
    $region8: #{tpu_custom_call.1} parent=1 // loop_exit
      _
    %1847 = vsyncpa [#allocation3], 1
    %s1848 = scalar_lea.sflag [#allocation3], 1
    %1849 = vsyncpa %s1848, 1
    %1850 = vsyncpa [#allocation6], 1
    %1851 = vsyncpa [#allocation4], 1
    %s1852 = scalar_lea.sflag [#allocation4], 1
    %1853 = vsyncpa %s1852, 1

</llo_original>
